<compile_context>
chip_gen: v6e
topology: v6e:2x2x1
jax: 0.10.0
libtpu: 0.0.40
codegen_flags: <defaults>
</compile_context>

<pallas_src>
import jax
import jax.numpy as jnp
from jax import lax
from jax.experimental import pallas as pl
from jax.experimental.pallas import tpu as pltpu

# ---------------- model dims (small, synthetic) ----------------
B = 2                       # batch
C_IN = 4                    # input channels
H = W = 16                  # spatial
K = 3                       # conv kernel (padding=1, stride=1 -> same spatial size)
F = 32                      # conv output channels
NUM_CLASSES = 10
NC_PAD = 128                # lane-dense output width (multiple of 128)
HW = H * W                  # 256
HP = H + 2                  # vertically padded rows per image
ROW_STRIDE = HP * W         # 288 rows per image in the flattened (b, hp, w) layout
NROWS = B * ROW_STRIDE      # 576 conv-output rows (incl. 2 garbage hp rows per image)
VPAD = W                    # extra zero rows top/bottom so shifted slices stay in-bounds
XH_ROWS = NROWS + 2 * VPAD  # 608
CK = C_IN * K               # 12 = contraction dim per vertical conv tap


# ---------------- Pallas kernel ----------------
def backbone_kernel(xh_ref, wrows_ref, bc_ref, wl_ref, bl_ref, out_ref):
    # xh_ref:    (XH_ROWS, CK) bf16  horizontally-gathered, vertically zero-padded input rows
    # wrows_ref: (K, CK, F)    bf16  conv weight split per vertical tap (feature order c, kw)
    # bc_ref:    (1, F)        f32   conv bias
    # wl_ref:    (F, NC_PAD)   bf16  classifier weight, zero-padded to 128 lanes
    # bl_ref:    (1, NC_PAD)   f32   classifier bias, zero-padded
    # out_ref:   (B, NC_PAD)   f32   lane-dense logits
    #
    # Conv as 3 accumulating MXU matmuls over tile-aligned shifted slices of the ref
    # (one flattened M=576 matmul per vertical tap; no batched dot_general).
    acc = jnp.dot(xh_ref[0:NROWS, :], wrows_ref[0],
                  preferred_element_type=jnp.float32)
    for i in range(1, K):  # static unroll
        acc = acc + jnp.dot(xh_ref[i * W:i * W + NROWS, :], wrows_ref[i],
                            preferred_element_type=jnp.float32)

    hidden = jnp.maximum(acc + bc_ref[...], 0.0)          # f32 bias + ReLU (VPU)

    # Global average pool on the MXU: (B, NROWS) pooling matrix built in-register.
    # Valid rows of image b are rel = col - b*ROW_STRIDE in [W, W+HW); everything else
    # (other images, the 2 garbage hp rows per image) gets weight 0.
    col = lax.broadcasted_iota(jnp.int32, (B, NROWS), 1)
    row = lax.broadcasted_iota(jnp.int32, (B, NROWS), 0)
    rel = col - row * ROW_STRIDE
    valid = (rel >= W) & (rel < W + HW)
    pmat = jnp.where(valid, jnp.float32(1.0 / HW), jnp.float32(0.0))
    pooled = jnp.dot(pmat, hidden, preferred_element_type=jnp.float32)   # (B, F)

    # Lane-dense classifier matmul + bias.
    logits = jnp.dot(pooled.astype(jnp.bfloat16), wl_ref[...],
                     preferred_element_type=jnp.float32) + bl_ref[...]
    out_ref[...] = logits


def _pallas_backbone(xh, wrows, bc, wl, bl):
    # Everything fits comfortably in VMEM (<50 KiB total) -> single invocation, no grid.
    # TODO(synk): when scaling B/HW, add a 'parallel' row-tile grid (dimension_semantics) so
    # v7x's two TensorCores split the work and blocks stay well under its 64 MiB VMEM.
    return pl.pallas_call(
        backbone_kernel,
        out_shape=jax.ShapeDtypeStruct((B, NC_PAD), jnp.float32),
        in_specs=[pl.BlockSpec(memory_space=pltpu.MemorySpace.VMEM)] * 5,
        out_specs=pl.BlockSpec(memory_space=pltpu.MemorySpace.VMEM),
    )(xh, wrows, bc, wl, bl)


# ---------------- layout prep (fused under jit with the pallas_call) ----------------
def _build_inputs(x, conv_w, conv_b, lin_w, lin_b):
    # Horizontal conv taps gathered here (3x bytes of x, vs 9x for full im2col);
    # vertical taps handled in-kernel via the shifted-slice matmuls.
    xn = jnp.transpose(x, (0, 2, 3, 1))                           # NCHW -> NHWC
    xpad = jnp.pad(xn, ((0, 0), (1, 1), (1, 1), (0, 0)))          # (B, HP, W+2, C)
    cols = [xpad[:, :, j:j + W, :] for j in range(K)]             # K x (B, HP, W, C)
    xh = jnp.stack(cols, axis=4)                                  # (B, HP, W, C, K)
    xh = xh.reshape(NROWS, CK)                                    # row = (b, hp, w), col = (c, kw)
    xh = jnp.pad(xh, ((VPAD, VPAD), (0, 0))).astype(jnp.bfloat16)  # (608, 12)

    # conv_w (F, C, K, K) -> (K, C*K, F): wrows[i, c*K + j, f] = conv_w[f, c, i, j]
    wrows = jnp.transpose(conv_w, (2, 1, 3, 0)).reshape(K, CK, F).astype(jnp.bfloat16)
    bc = conv_b.reshape(1, F).astype(jnp.float32)

    wl = jnp.zeros((F, NC_PAD), jnp.float32).at[:, :NUM_CLASSES].set(lin_w.T)
    wl = wl.astype(jnp.bfloat16)
    bl = jnp.zeros((1, NC_PAD), jnp.float32).at[:, :NUM_CLASSES].set(lin_b)
    return xh, wrows, bc, wl, bl


@jax.jit
def forward(x, conv_w, conv_b, lin_w, lin_b):
    xh, wrows, bc, wl, bl = _build_inputs(x, conv_w, conv_b, lin_w, lin_b)
    logits = _pallas_backbone(xh, wrows, bc, wl, bl)
    return logits[:, :NUM_CLASSES]


# ---------------- pure-JAX f32 reference (original im2col formulation) ----------------
def _im2col_nchw(x):
    xp = jnp.pad(x, ((0, 0), (0, 0), (1, 1), (1, 1)))
    cols = []
    for i in range(K):
        for j in range(K):
            cols.append(xp[:, :, i:i + H, j:j + W])               # (B, C, H, W)
    stacked = jnp.stack(cols, axis=2)                             # (B, C, K*K, H, W)
    stacked = jnp.transpose(stacked, (0, 3, 4, 1, 2))             # (B, H, W, C, K*K)
    return stacked.reshape(B, HW, C_IN * K * K).astype(jnp.float32)


def reference_forward(x, conv_w, conv_b, lin_w, lin_b):
    patches = _im2col_nchw(x)
    wc = conv_w.reshape(F, C_IN * K * K).T                        # (P, F), order (C, kh, kw)
    hidden = jnp.maximum(jnp.einsum("bsp,pf->bsf", patches, wc) + conv_b[None, None, :], 0.0)
    pooled = jnp.mean(hidden, axis=1)
    return pooled @ lin_w.T + lin_b[None, :]


if __name__ == "__main__":
    key = jax.random.PRNGKey(0)
    kx, k1, k2, k3, k4 = jax.random.split(key, 5)
    x = jax.random.normal(kx, (B, C_IN, H, W), jnp.float32)       # NCHW input
    # PyTorch-style parameter shapes
    conv_w = jax.random.normal(k1, (F, C_IN, K, K), jnp.float32) * 0.1
    conv_b = jax.random.normal(k2, (F,), jnp.float32) * 0.1
    lin_w = jax.random.normal(k3, (NUM_CLASSES, F), jnp.float32) * 0.1
    lin_b = jax.random.normal(k4, (NUM_CLASSES,), jnp.float32) * 0.1

    logits = jax.block_until_ready(forward(x, conv_w, conv_b, lin_w, lin_b))
    ref = jax.block_until_ready(reference_forward(x, conv_w, conv_b, lin_w, lin_b))

    assert logits.shape == (B, NUM_CLASSES)
    # bf16 matmul operands (f32 accumulation) -> loosened tolerance vs. the f32 reference.
    assert jnp.allclose(logits, ref, atol=2e-2, rtol=2e-2), \
        float(jnp.max(jnp.abs(logits - ref)))

    print("KERNEL_OK")
</pallas_src>

<mosaic_0001>
module attributes {stable_mosaic.version = 11 : i64} {
  func.func @backbone_kernel(%arg0: memref<608x12xbf16, #tpu.memory_space<vmem>>, %arg1: memref<3x12x32xbf16, #tpu.memory_space<vmem>>, %arg2: memref<1x32xf32, #tpu.memory_space<vmem>>, %arg3: memref<32x128xbf16, #tpu.memory_space<vmem>>, %arg4: memref<1x128xf32, #tpu.memory_space<vmem>>, %arg5: memref<2x128xf32, #tpu.memory_space<vmem>>) attributes {dimension_semantics = [], scalar_prefetch = 0 : i64, scratch_operands = 0 : i64, tpu.core_type = #tpu.core_type<tc>} {
    %c0 = arith.constant 0 : index
    %c0_0 = arith.constant 0 : index
    %0 = vector.load %arg0[%c0, %c0_0] : memref<608x12xbf16, #tpu.memory_space<vmem>>, vector<576x12xbf16>
    %c0_1 = arith.constant 0 : index
    %c0_2 = arith.constant 0 : index
    %c0_3 = arith.constant 0 : index
    %1 = vector.load %arg1[%c0_1, %c0_2, %c0_3] : memref<3x12x32xbf16, #tpu.memory_space<vmem>>, vector<1x12x32xbf16>
    %2 = vector.shape_cast %1 : vector<1x12x32xbf16> to vector<12x32xbf16>
    %cst = arith.constant dense<0.000000e+00> : vector<576x32xf32>
    %3 = tpu.matmul %0, %2, %cst {dimension_numbers = #tpu.dot_dimension_numbers<[1], [0], [0], [1], [0, 0, 1, 1], [], []>} : vector<576x12xbf16>, vector<12x32xbf16>, vector<576x32xf32> -> vector<576x32xf32>
    %c16 = arith.constant 16 : index
    %c0_4 = arith.constant 0 : index
    %4 = vector.load %arg0[%c16, %c0_4] : memref<608x12xbf16, #tpu.memory_space<vmem>>, vector<576x12xbf16>
    %c1 = arith.constant 1 : index
    %c0_5 = arith.constant 0 : index
    %c0_6 = arith.constant 0 : index
    %5 = vector.load %arg1[%c1, %c0_5, %c0_6] : memref<3x12x32xbf16, #tpu.memory_space<vmem>>, vector<1x12x32xbf16>
    %6 = vector.shape_cast %5 : vector<1x12x32xbf16> to vector<12x32xbf16>
    %cst_7 = arith.constant dense<0.000000e+00> : vector<576x32xf32>
    %7 = tpu.matmul %4, %6, %cst_7 {dimension_numbers = #tpu.dot_dimension_numbers<[1], [0], [0], [1], [0, 0, 1, 1], [], []>} : vector<576x12xbf16>, vector<12x32xbf16>, vector<576x32xf32> -> vector<576x32xf32>
    %8 = arith.addf %3, %7 : vector<576x32xf32>
    %c32 = arith.constant 32 : index
    %c0_8 = arith.constant 0 : index
    %9 = vector.load %arg0[%c32, %c0_8] : memref<608x12xbf16, #tpu.memory_space<vmem>>, vector<576x12xbf16>
    %c2 = arith.constant 2 : index
    %c0_9 = arith.constant 0 : index
    %c0_10 = arith.constant 0 : index
    %10 = vector.load %arg1[%c2, %c0_9, %c0_10] : memref<3x12x32xbf16, #tpu.memory_space<vmem>>, vector<1x12x32xbf16>
    %11 = vector.shape_cast %10 : vector<1x12x32xbf16> to vector<12x32xbf16>
    %cst_11 = arith.constant dense<0.000000e+00> : vector<576x32xf32>
    %12 = tpu.matmul %9, %11, %cst_11 {dimension_numbers = #tpu.dot_dimension_numbers<[1], [0], [0], [1], [0, 0, 1, 1], [], []>} : vector<576x12xbf16>, vector<12x32xbf16>, vector<576x32xf32> -> vector<576x32xf32>
    %13 = arith.addf %8, %12 : vector<576x32xf32>
    %c0_12 = arith.constant 0 : index
    %c0_13 = arith.constant 0 : index
    %14 = vector.load %arg2[%c0_12, %c0_13] : memref<1x32xf32, #tpu.memory_space<vmem>>, vector<1x32xf32>
    %15 = vector.broadcast %14 : vector<1x32xf32> to vector<576x32xf32>
    %16 = arith.addf %13, %15 : vector<576x32xf32>
    %cst_14 = arith.constant 0.000000e+00 : f32
    %17 = vector.broadcast %cst_14 : f32 to vector<576x32xf32>
    %18 = arith.maximumf %16, %17 : vector<576x32xf32>
    %19 = tpu.iota {dimensions = array<i32: 1>} : vector<2x576xi32>
    %20 = tpu.iota {dimensions = array<i32: 0>} : vector<2x576xi32>
    %c288_i32 = arith.constant 288 : i32
    %21 = vector.broadcast %c288_i32 : i32 to vector<2x576xi32>
    %22 = arith.muli %20, %21 : vector<2x576xi32>
    %23 = arith.subi %19, %22 : vector<2x576xi32>
    %c16_i32 = arith.constant 16 : i32
    %24 = vector.broadcast %c16_i32 : i32 to vector<2x576xi32>
    %25 = arith.cmpi sge, %23, %24 : vector<2x576xi32>
    %c272_i32 = arith.constant 272 : i32
    %26 = vector.broadcast %c272_i32 : i32 to vector<2x576xi32>
    %27 = arith.cmpi slt, %23, %26 : vector<2x576xi32>
    %28 = arith.andi %25, %27 : vector<2x576xi1>
    %cst_15 = arith.constant 3.906250e-03 : f32
    %cst_16 = arith.constant 0.000000e+00 : f32
    %29 = vector.broadcast %cst_15 : f32 to vector<2x576xf32>
    %30 = vector.broadcast %cst_16 : f32 to vector<2x576xf32>
    %31 = arith.select %28, %29, %30 : vector<2x576xi1>, vector<2x576xf32>
    %cst_17 = arith.constant dense<0.000000e+00> : vector<2x32xf32>
    %32 = tpu.matmul %31, %18, %cst_17 {dimension_numbers = #tpu.dot_dimension_numbers<[1], [0], [0], [1], [0, 0, 1, 1], [], []>} : vector<2x576xf32>, vector<576x32xf32>, vector<2x32xf32> -> vector<2x32xf32>
    %33 = arith.truncf %32 : vector<2x32xf32> to vector<2x32xbf16>
    %c0_18 = arith.constant 0 : index
    %c0_19 = arith.constant 0 : index
    %34 = vector.load %arg3[%c0_18, %c0_19] : memref<32x128xbf16, #tpu.memory_space<vmem>>, vector<32x128xbf16>
    %cst_20 = arith.constant dense<0.000000e+00> : vector<2x128xf32>
    %35 = tpu.matmul %33, %34, %cst_20 {dimension_numbers = #tpu.dot_dimension_numbers<[1], [0], [0], [1], [0, 0, 1, 1], [], []>} : vector<2x32xbf16>, vector<32x128xbf16>, vector<2x128xf32> -> vector<2x128xf32>
    %c0_21 = arith.constant 0 : index
    %c0_22 = arith.constant 0 : index
    %36 = vector.load %arg4[%c0_21, %c0_22] : memref<1x128xf32, #tpu.memory_space<vmem>>, vector<1x128xf32>
    %37 = vector.broadcast %36 : vector<1x128xf32> to vector<2x128xf32>
    %38 = arith.addf %35, %37 : vector<2x128xf32>
    %c0_23 = arith.constant 0 : index
    %c0_24 = arith.constant 0 : index
    %39 = vector.load %arg5[%c0_23, %c0_24] : memref<2x128xf32, #tpu.memory_space<vmem>>, vector<2x128xf32>
    tpu.vector_store %arg5[%c0_23, %c0_24], %38 {strides = array<i32>} : memref<2x128xf32, #tpu.memory_space<vmem>>, vector<2x128xf32>,
    return
  }
}

</mosaic_0001>

<llo_original>
// kernel: forward.1
$region0: #{forward.1}
  #allocation0 [shape = 'u32[]', space=smem, size = 0x4, offset = 0x4, fixed_abs, tag = 'smem constant byte address 0x4 - core index']
  #allocation1 [shape = 'u32[144,128]{1,0:T(1,128)}', space=vmem, size = 0x12000, scoped, tag = 'internal scratch']
  %s0 = inlined_call_operand.vmem [shape: bf16[608,12], index: 0, kind: input, shape index: {}]
  %s1 = inlined_call_operand.vmem [shape: bf16[3,12,32], index: 1, kind: input, shape index: {}]
  %s2 = inlined_call_operand.vmem [shape: f32[1,32], index: 2, kind: input, shape index: {}]
  %s3 = inlined_call_operand.vmem [shape: bf16[32,128], index: 3, kind: input, shape index: {}]
  %s4 = inlined_call_operand.vmem [shape: f32[1,128], index: 4, kind: input, shape index: {}]
  %s5 = inlined_call_operand.hbm [shape: f32[2,128], index: 5, kind: output, shape index: {}]
  %s6 = sld [smem:[#allocation0]]
  $region30: #{forward.1} parent=0
    _
  %s8 = ssub.s32 1, %s6
  %s9 = scalar_select 0, %s8, %s6
  $region1: #{forward.1} parent=0
    #allocation2 [shape = 'u8[1024]{0}', space=vmem, size = 0x400, scoped, tag = 'output window, operand 0, single buffered']
    #allocation3 [shape = 's32[1]{0}', space=sflag, size = 0x4, scoped, tag = 'scoped memory for forward.1']
    %10 = vsyncpa [#allocation3], 0
    // Predicated region
    $region2: #{forward.1} parent=1 // pred_check
      _
    $region3: #{forward.1} parent=1 // pred_check_branch
      %12 = sbr.rel (0) target = $region5
    $region4: #{forward.1} parent=1 // pred_region
      _
    $region5: #{forward.1} parent=1 // pred_fallthru
      _
    // Predicated region
    $region6: #{forward.1} parent=1 // pred_check
      _
    $region7: #{forward.1} parent=1 // pred_check_branch
      %14 = sbr.rel (0) target = $region9
    $region8: #{forward.1} parent=1 // pred_region
      _
    $region9: #{forward.1} parent=1 // pred_fallthru
      _
    // Predicated region
    $region10: #{forward.1} parent=1 // pred_check
      _
    $region11: #{forward.1} parent=1 // pred_check_branch
      %16 = sbr.rel (0) target = $region13
    $region12: #{forward.1} parent=1 // pred_region
      _
    $region13: #{forward.1} parent=1 // pred_fallthru
      _
    // Predicated region
    $region14: #{forward.1} parent=1 // pred_check
      _
    $region15: #{forward.1} parent=1 // pred_check_branch
      %18 = sbr.rel (0) target = $region17
    $region16: #{forward.1} parent=1 // pred_region
      _
    $region17: #{forward.1} parent=1 // pred_fallthru
      _
    // Predicated region
    $region18: #{forward.1} parent=1 // pred_check
      _
    $region19: #{forward.1} parent=1 // pred_check_branch
      %20 = sbr.rel (0) target = $region21
    $region20: #{forward.1} parent=1 // pred_region
      _
    $region21: #{forward.1} parent=1 // pred_fallthru
      _
    %v22 = vld [vmem:[%s0] sm:$0xf]
    %v23 = vld [vmem:[%s0 + $0x4] sm:$0xf]
    %v24 = vld [vmem:[%s0 + $0x8] sm:$0xf]
    %v25 = vld [vmem:[%s0 + $0xc] sm:$0xf]
    %v26 = vld [vmem:[%s0 + $0x10] sm:$0xf]
    %v27 = vld [vmem:[%s0 + $0x14] sm:$0xf]
    %v28 = vld [vmem:[%s0 + $0x18] sm:$0xf]
    %v29 = vld [vmem:[%s0 + $0x1c] sm:$0xf]
    %v30 = vld [vmem:[%s0 + $0x20] sm:$0xf]
    %v31 = vld [vmem:[%s0 + $0x24] sm:$0xf]
    %v32 = vld [vmem:[%s0 + $0x28] sm:$0xf]
    %v33 = vld [vmem:[%s0 + $0x2c] sm:$0xf]
    %v34 = vld [vmem:[%s0 + $0x30] sm:$0xf]
    %v35 = vld [vmem:[%s0 + $0x34] sm:$0xf]
    %v36 = vld [vmem:[%s0 + $0x38] sm:$0xf]
    %v37 = vld [vmem:[%s0 + $0x3c] sm:$0xf]
    %v38 = vld [vmem:[%s0 + $0x40] sm:$0xf]
    %v39 = vld [vmem:[%s0 + $0x44] sm:$0xf]
    %v40 = vld [vmem:[%s0 + $0x48] sm:$0xf]
    %v41 = vld [vmem:[%s0 + $0x4c] sm:$0xf]
    %v42 = vld [vmem:[%s0 + $0x50] sm:$0xf]
    %v43 = vld [vmem:[%s0 + $0x54] sm:$0xf]
    %v44 = vld [vmem:[%s0 + $0x58] sm:$0xf]
    %v45 = vld [vmem:[%s0 + $0x5c] sm:$0xf]
    %v46 = vld [vmem:[%s0 + $0x60] sm:$0xf]
    %v47 = vld [vmem:[%s0 + $0x64] sm:$0xf]
    %v48 = vld [vmem:[%s0 + $0x68] sm:$0xf]
    %v49 = vld [vmem:[%s0 + $0x6c] sm:$0xf]
    %v50 = vld [vmem:[%s0 + $0x70] sm:$0xf]
    %v51 = vld [vmem:[%s0 + $0x74] sm:$0xf]
    %v52 = vld [vmem:[%s0 + $0x78] sm:$0xf]
    %v53 = vld [vmem:[%s0 + $0x7c] sm:$0xf]
    %v54 = vld [vmem:[%s0 + $0x80] sm:$0xf]
    %v55 = vld [vmem:[%s0 + $0x84] sm:$0xf]
    %v56 = vld [vmem:[%s0 + $0x88] sm:$0xf]
    %v57 = vld [vmem:[%s0 + $0x8c] sm:$0xf]
    %v58 = vld [vmem:[%s0 + $0x90] sm:$0xf]
    %v59 = vld [vmem:[%s0 + $0x94] sm:$0xf]
    %v60 = vld [vmem:[%s0 + $0x98] sm:$0xf]
    %v61 = vld [vmem:[%s0 + $0x9c] sm:$0xf]
    %v62 = vld [vmem:[%s0 + $0xa0] sm:$0xf]
    %v63 = vld [vmem:[%s0 + $0xa4] sm:$0xf]
    %v64 = vld [vmem:[%s0 + $0xa8] sm:$0xf]
    %v65 = vld [vmem:[%s0 + $0xac] sm:$0xf]
    %v66 = vld [vmem:[%s0 + $0xb0] sm:$0xf]
    %v67 = vld [vmem:[%s0 + $0xb4] sm:$0xf]
    %v68 = vld [vmem:[%s0 + $0xb8] sm:$0xf]
    %v69 = vld [vmem:[%s0 + $0xbc] sm:$0xf]
    %v70 = vld [vmem:[%s0 + $0xc0] sm:$0xf]
    %v71 = vld [vmem:[%s0 + $0xc4] sm:$0xf]
    %v72 = vld [vmem:[%s0 + $0xc8] sm:$0xf]
    %v73 = vld [vmem:[%s0 + $0xcc] sm:$0xf]
    %v74 = vld [vmem:[%s0 + $0xd0] sm:$0xf]
    %v75 = vld [vmem:[%s0 + $0xd4] sm:$0xf]
    %v76 = vld [vmem:[%s0 + $0xd8] sm:$0xf]
    %v77 = vld [vmem:[%s0 + $0xdc] sm:$0xf]
    %v78 = vld [vmem:[%s0 + $0xe0] sm:$0xf]
    %v79 = vld [vmem:[%s0 + $0xe4] sm:$0xf]
    %v80 = vld [vmem:[%s0 + $0xe8] sm:$0xf]
    %v81 = vld [vmem:[%s0 + $0xec] sm:$0xf]
    %v82 = vld [vmem:[%s0 + $0xf0] sm:$0xf]
    %v83 = vld [vmem:[%s0 + $0xf4] sm:$0xf]
    %v84 = vld [vmem:[%s0 + $0xf8] sm:$0xf]
    %v85 = vld [vmem:[%s0 + $0xfc] sm:$0xf]
    %v86 = vld [vmem:[%s0 + $0x100] sm:$0xf]
    %v87 = vld [vmem:[%s0 + $0x104] sm:$0xf]
    %v88 = vld [vmem:[%s0 + $0x108] sm:$0xf]
    %v89 = vld [vmem:[%s0 + $0x10c] sm:$0xf]
    %v90 = vld [vmem:[%s0 + $0x110] sm:$0xf]
    %v91 = vld [vmem:[%s0 + $0x114] sm:$0xf]
    %v92 = vld [vmem:[%s0 + $0x118] sm:$0xf]
    %v93 = vld [vmem:[%s0 + $0x11c] sm:$0xf]
    %v94 = vld [vmem:[%s1] sm:$0xf]
    %v95 = vld [vmem:[%s1 + $0x4] sm:$0x3]
    %v96 = vld [vmem:[%s0 + $0x120] sm:$0xf]
    %v97 = vld [vmem:[%s0 + $0x124] sm:$0xf]
    %s98 = scalar_lea.vmem %s1, 8
    %v99 = vld [vmem:[%s98] sm:$0xf]
    %v100 = vld [vmem:[%s98 + $0x4] sm:$0x3]
    %v173 = vunpack.c.l.b16 %v24
    %v174 = vunpack.c.l.b16 %v25
    %v175 = vunpack.c.l.b16 %v26
    %v176 = vunpack.c.l.b16 %v27
    %v177 = vunpack.c.l.b16 %v28
    %v178 = vunpack.c.l.b16 %v29
    %v179 = vunpack.c.l.b16 %v30
    %v180 = vunpack.c.l.b16 %v31
    %v181 = vunpack.c.l.b16 %v32
    %v182 = vunpack.c.l.b16 %v33
    %v183 = vunpack.c.l.b16 %v34
    %v184 = vunpack.c.l.b16 %v35
    %v185 = vunpack.c.l.b16 %v36
    %v186 = vunpack.c.l.b16 %v37
    %v187 = vunpack.c.l.b16 %v38
    %v188 = vunpack.c.l.b16 %v39
    %v189 = vunpack.c.l.b16 %v40
    %v190 = vunpack.c.l.b16 %v41
    %v191 = vunpack.c.l.b16 %v42
    %v192 = vunpack.c.l.b16 %v43
    %v193 = vunpack.c.l.b16 %v44
    %v194 = vunpack.c.l.b16 %v45
    %v195 = vunpack.c.l.b16 %v46
    %v196 = vunpack.c.l.b16 %v47
    %v197 = vunpack.c.l.b16 %v48
    %v198 = vunpack.c.l.b16 %v49
    %v199 = vunpack.c.l.b16 %v50
    %v200 = vunpack.c.l.b16 %v51
    %v201 = vunpack.c.l.b16 %v52
    %v202 = vunpack.c.l.b16 %v53
    %v203 = vunpack.c.l.b16 %v54
    %v204 = vunpack.c.l.b16 %v55
    %v205 = vunpack.c.l.b16 %v56
    %v206 = vunpack.c.l.b16 %v57
    %v207 = vunpack.c.l.b16 %v58
    %v208 = vunpack.c.l.b16 %v59
    %v209 = vunpack.c.l.b16 %v60
    %v210 = vunpack.c.l.b16 %v61
    %v211 = vunpack.c.l.b16 %v62
    %v212 = vunpack.c.l.b16 %v63
    %v213 = vunpack.c.l.b16 %v64
    %v214 = vunpack.c.l.b16 %v65
    %v215 = vunpack.c.l.b16 %v66
    %v216 = vunpack.c.l.b16 %v67
    %v217 = vunpack.c.l.b16 %v68
    %v218 = vunpack.c.l.b16 %v69
    %v219 = vunpack.c.l.b16 %v70
    %v220 = vunpack.c.l.b16 %v71
    %v221 = vunpack.c.l.b16 %v72
    %v222 = vunpack.c.l.b16 %v73
    %v223 = vunpack.c.l.b16 %v74
    %v224 = vunpack.c.l.b16 %v75
    %v225 = vunpack.c.l.b16 %v76
    %v226 = vunpack.c.l.b16 %v77
    %v227 = vunpack.c.l.b16 %v78
    %v228 = vunpack.c.l.b16 %v79
    %v229 = vunpack.c.l.b16 %v80
    %v230 = vunpack.c.l.b16 %v81
    %v231 = vunpack.c.l.b16 %v82
    %v232 = vunpack.c.l.b16 %v83
    %v233 = vunpack.c.l.b16 %v84
    %v234 = vunpack.c.l.b16 %v85
    %v235 = vunpack.c.l.b16 %v86
    %v236 = vunpack.c.l.b16 %v87
    %v237 = vunpack.c.l.b16 %v88
    %v238 = vunpack.c.l.b16 %v89
    %v239 = vunpack.c.l.b16 %v90
    %v240 = vunpack.c.l.b16 %v91
    %v241 = vunpack.c.l.b16 %v92
    %v242 = vunpack.c.l.b16 %v93
    %v243 = vunpack.c.l.b16 %v96
    %v244 = vunpack.c.l.b16 %v97
    %v245 = vpack.c.b16 %v174, %v173
    %v246 = vpack.c.b16 %v176, %v175
    %v247 = vpack.c.b16 %v178, %v177
    %v248 = vpack.c.b16 %v180, %v179
    %v249 = vpack.c.b16 %v182, %v181
    %v250 = vpack.c.b16 %v184, %v183
    %v251 = vpack.c.b16 %v186, %v185
    %v252 = vpack.c.b16 %v188, %v187
    %v253 = vpack.c.b16 %v190, %v189
    %v254 = vpack.c.b16 %v192, %v191
    %v255 = vpack.c.b16 %v194, %v193
    %v256 = vpack.c.b16 %v196, %v195
    %v257 = vpack.c.b16 %v198, %v197
    %v258 = vpack.c.b16 %v200, %v199
    %v259 = vpack.c.b16 %v202, %v201
    %v260 = vpack.c.b16 %v204, %v203
    %v261 = vpack.c.b16 %v206, %v205
    %v262 = vpack.c.b16 %v208, %v207
    %v263 = vpack.c.b16 %v210, %v209
    %v264 = vpack.c.b16 %v212, %v211
    %v265 = vpack.c.b16 %v214, %v213
    %v266 = vpack.c.b16 %v216, %v215
    %v267 = vpack.c.b16 %v218, %v217
    %v268 = vpack.c.b16 %v220, %v219
    %v269 = vpack.c.b16 %v222, %v221
    %v270 = vpack.c.b16 %v224, %v223
    %v271 = vpack.c.b16 %v226, %v225
    %v272 = vpack.c.b16 %v228, %v227
    %v273 = vpack.c.b16 %v230, %v229
    %v274 = vpack.c.b16 %v232, %v231
    %v275 = vpack.c.b16 %v234, %v233
    %v276 = vpack.c.b16 %v236, %v235
    %v277 = vpack.c.b16 %v238, %v237
    %v278 = vpack.c.b16 %v240, %v239
    %v279 = vpack.c.b16 %v242, %v241
    %v280 = vpack.c.b16 %v244, %v243
    %v283 = vunpack.c.l.b16 %v99
    %v284 = vunpack.c.l.b16 %v100
    %v285 = vpack.c.b16 %v284, %v283
    %vm286 = vcmask 97280
    %v288 = vsel %vm286, %v245, 0
    %v291 = vsel %vm286, %v246, 0
    %v294 = vsel %vm286, %v247, 0
    %v297 = vsel %vm286, %v248, 0
    %v300 = vsel %vm286, %v249, 0
    %v303 = vsel %vm286, %v250, 0
    %v306 = vsel %vm286, %v251, 0
    %v309 = vsel %vm286, %v252, 0
    %v312 = vsel %vm286, %v253, 0
    %v315 = vsel %vm286, %v254, 0
    %v318 = vsel %vm286, %v255, 0
    %v321 = vsel %vm286, %v256, 0
    %v324 = vsel %vm286, %v257, 0
    %v327 = vsel %vm286, %v258, 0
    %v330 = vsel %vm286, %v259, 0
    %v333 = vsel %vm286, %v260, 0
    %v336 = vsel %vm286, %v261, 0
    %v339 = vsel %vm286, %v262, 0
    %v342 = vsel %vm286, %v263, 0
    %v345 = vsel %vm286, %v264, 0
    %v348 = vsel %vm286, %v265, 0
    %v351 = vsel %vm286, %v266, 0
    %v354 = vsel %vm286, %v267, 0
    %v357 = vsel %vm286, %v268, 0
    %v360 = vsel %vm286, %v269, 0
    %v363 = vsel %vm286, %v270, 0
    %v366 = vsel %vm286, %v271, 0
    %v369 = vsel %vm286, %v272, 0
    %v372 = vsel %vm286, %v273, 0
    %v375 = vsel %vm286, %v274, 0
    %v378 = vsel %vm286, %v275, 0
    %v381 = vsel %vm286, %v276, 0
    %v384 = vsel %vm286, %v277, 0
    %v387 = vsel %vm286, %v278, 0
    %v390 = vsel %vm286, %v279, 0
    %v393 = vsel %vm286, %v280, 0
    %vm395 = vcmask 1045504
    %v397 = vsel %vm395, %v285, 0
    %399 = vmatprep.subr.bf16.mxu0 0
    %400 = vmatpush1.bf16.msra.mxu0 0
    %401 = vmatprep.subr.bf16.mxu0 0
    %402 = vmatpush1.bf16.msra.mxu0 0
    %403 = vmatprep.subr.bf16.mxu0 0
    %404 = vmatpush1.bf16.msra.mxu0 0
    %405 = vmatprep.subr.bf16.mxu0 0
    %406 = vmatpush1.bf16.msra.mxu0 0
    %407 = vmatprep.subr.bf16.mxu0 0
    %408 = vmatpush1.bf16.msra.mxu0 0
    %409 = vmatprep.subr.bf16.mxu0 0
    %410 = vmatpush1.bf16.msra.mxu0 0
    %411 = vmatprep.subr.bf16.mxu0 0
    %412 = vmatpush1.bf16.msra.mxu0 0
    %413 = vmatprep.subr.bf16.mxu0 0
    %414 = vmatpush1.bf16.msra.mxu0 %v397
    %415 = vmatprep.subr.bf16.mxu0 0
    %416 = vmatpush2.bf16.msra.mxu0 0
    %417 = vmatprep.subr.bf16.mxu0 0
    %418 = vmatpush2.bf16.msra.mxu0 0
    %419 = vmatprep.subr.bf16.mxu0 0
    %420 = vmatpush2.bf16.msra.mxu0 0
    %421 = vmatprep.subr.bf16.mxu0 0
    %422 = vmatpush2.bf16.msra.mxu0 0
    %423 = vmatprep.subr.bf16.mxu0 0
    %424 = vmatpush2.bf16.msra.mxu0 0
    %425 = vmatprep.subr.bf16.mxu0 0
    %426 = vmatpush2.bf16.msra.mxu0 0
    %427 = vmatprep.subr.bf16.mxu0 0
    %428 = vmatpush2.bf16.msra.mxu0 0
    %429 = vmatprep.subr.bf16.mxu0 0
    %430 = vmatpush2.bf16.msra.mxu0 0
    %431 = vmatprep.mubr.bf16.mxu0 0
    %432 = vmatmul.mubr.bf16.gmra.mxu0 %v288
    %v433 = vpop.f32.mrf.mxu0
    %v434 = vadd.f32 0.0, %v433
    %v435 = vpop.f32.mrf.mxu0
    %v436 = vpop.f32.mrf.mxu0
    %v437 = vadd.f32 0.0, %v436
    %v438 = vpop.f32.mrf.mxu0
    %439 = vmatprep.mubr.bf16.mxu0 0
    %440 = vmatmul.mubr.bf16.gmra.mxu0 %v291
    %v441 = vpop.f32.mrf.mxu0
    %v442 = vadd.f32 0.0, %v441
    %v443 = vpop.f32.mrf.mxu0
    %v444 = vpop.f32.mrf.mxu0
    %v445 = vadd.f32 0.0, %v444
    %v446 = vpop.f32.mrf.mxu0
    %447 = vmatprep.mubr.bf16.mxu0 0
    %448 = vmatmul.mubr.bf16.gmra.mxu0 %v294
    %v449 = vpop.f32.mrf.mxu0
    %v450 = vadd.f32 0.0, %v449
    %v451 = vpop.f32.mrf.mxu0
    %v452 = vpop.f32.mrf.mxu0
    %v453 = vadd.f32 0.0, %v452
    %v454 = vpop.f32.mrf.mxu0
    %455 = vmatprep.mubr.bf16.mxu0 0
    %456 = vmatmul.mubr.bf16.gmra.mxu0 %v297
    %v457 = vpop.f32.mrf.mxu0
    %v458 = vadd.f32 0.0, %v457
    %v459 = vpop.f32.mrf.mxu0
    %v460 = vpop.f32.mrf.mxu0
    %v461 = vadd.f32 0.0, %v460
    %v462 = vpop.f32.mrf.mxu0
    %463 = vmatprep.mubr.bf16.mxu0 0
    %464 = vmatmul.mubr.bf16.gmra.mxu0 %v300
    %v465 = vpop.f32.mrf.mxu0
    %v466 = vadd.f32 0.0, %v465
    %v467 = vpop.f32.mrf.mxu0
    %v468 = vpop.f32.mrf.mxu0
    %v469 = vadd.f32 0.0, %v468
    %v470 = vpop.f32.mrf.mxu0
    %471 = vmatprep.mubr.bf16.mxu0 0
    %472 = vmatmul.mubr.bf16.gmra.mxu0 %v303
    %v473 = vpop.f32.mrf.mxu0
    %v474 = vadd.f32 0.0, %v473
    %v475 = vpop.f32.mrf.mxu0
    %v476 = vpop.f32.mrf.mxu0
    %v477 = vadd.f32 0.0, %v476
    %v478 = vpop.f32.mrf.mxu0
    %479 = vmatprep.mubr.bf16.mxu0 0
    %480 = vmatmul.mubr.bf16.gmra.mxu0 %v306
    %v481 = vpop.f32.mrf.mxu0
    %v482 = vadd.f32 0.0, %v481
    %v483 = vpop.f32.mrf.mxu0
    %v484 = vpop.f32.mrf.mxu0
    %v485 = vadd.f32 0.0, %v484
    %v486 = vpop.f32.mrf.mxu0
    %487 = vmatprep.mubr.bf16.mxu0 0
    %488 = vmatmul.mubr.bf16.gmra.mxu0 %v309
    %v489 = vpop.f32.mrf.mxu0
    %v490 = vadd.f32 0.0, %v489
    %v491 = vpop.f32.mrf.mxu0
    %v492 = vpop.f32.mrf.mxu0
    %v493 = vadd.f32 0.0, %v492
    %v494 = vpop.f32.mrf.mxu0
    %495 = vmatprep.mubr.bf16.mxu0 0
    %496 = vmatmul.mubr.bf16.gmra.mxu0 %v312
    %v497 = vpop.f32.mrf.mxu0
    %v498 = vadd.f32 0.0, %v497
    %v499 = vpop.f32.mrf.mxu0
    %v500 = vpop.f32.mrf.mxu0
    %v501 = vadd.f32 0.0, %v500
    %v502 = vpop.f32.mrf.mxu0
    %503 = vmatprep.mubr.bf16.mxu0 0
    %504 = vmatmul.mubr.bf16.gmra.mxu0 %v315
    %v505 = vpop.f32.mrf.mxu0
    %v506 = vadd.f32 0.0, %v505
    %v507 = vpop.f32.mrf.mxu0
    %v508 = vpop.f32.mrf.mxu0
    %v509 = vadd.f32 0.0, %v508
    %v510 = vpop.f32.mrf.mxu0
    %511 = vmatprep.mubr.bf16.mxu0 0
    %512 = vmatmul.mubr.bf16.gmra.mxu0 %v318
    %v513 = vpop.f32.mrf.mxu0
    %v514 = vadd.f32 0.0, %v513
    %v515 = vpop.f32.mrf.mxu0
    %v516 = vpop.f32.mrf.mxu0
    %v517 = vadd.f32 0.0, %v516
    %v518 = vpop.f32.mrf.mxu0
    %519 = vmatprep.mubr.bf16.mxu0 0
    %520 = vmatmul.mubr.bf16.gmra.mxu0 %v321
    %v521 = vpop.f32.mrf.mxu0
    %v522 = vadd.f32 0.0, %v521
    %v523 = vpop.f32.mrf.mxu0
    %v524 = vpop.f32.mrf.mxu0
    %v525 = vadd.f32 0.0, %v524
    %v526 = vpop.f32.mrf.mxu0
    %527 = vmatprep.mubr.bf16.mxu0 0
    %528 = vmatmul.mubr.bf16.gmra.mxu0 %v324
    %v529 = vpop.f32.mrf.mxu0
    %v530 = vadd.f32 0.0, %v529
    %v531 = vpop.f32.mrf.mxu0
    %v532 = vpop.f32.mrf.mxu0
    %v533 = vadd.f32 0.0, %v532
    %v534 = vpop.f32.mrf.mxu0
    %535 = vmatprep.mubr.bf16.mxu0 0
    %536 = vmatmul.mubr.bf16.gmra.mxu0 %v327
    %v537 = vpop.f32.mrf.mxu0
    %v538 = vadd.f32 0.0, %v537
    %v539 = vpop.f32.mrf.mxu0
    %v540 = vpop.f32.mrf.mxu0
    %v541 = vadd.f32 0.0, %v540
    %v542 = vpop.f32.mrf.mxu0
    %543 = vmatprep.mubr.bf16.mxu0 0
    %544 = vmatmul.mubr.bf16.gmra.mxu0 %v330
    %v545 = vpop.f32.mrf.mxu0
    %v546 = vadd.f32 0.0, %v545
    %v547 = vpop.f32.mrf.mxu0
    %v548 = vpop.f32.mrf.mxu0
    %v549 = vadd.f32 0.0, %v548
    %v550 = vpop.f32.mrf.mxu0
    %551 = vmatprep.mubr.bf16.mxu0 0
    %552 = vmatmul.mubr.bf16.gmra.mxu0 %v333
    %v553 = vpop.f32.mrf.mxu0
    %v554 = vadd.f32 0.0, %v553
    %v555 = vpop.f32.mrf.mxu0
    %v556 = vpop.f32.mrf.mxu0
    %v557 = vadd.f32 0.0, %v556
    %v558 = vpop.f32.mrf.mxu0
    %559 = vmatprep.mubr.bf16.mxu0 0
    %560 = vmatmul.mubr.bf16.gmra.mxu0 %v336
    %v561 = vpop.f32.mrf.mxu0
    %v562 = vadd.f32 0.0, %v561
    %v563 = vpop.f32.mrf.mxu0
    %v564 = vpop.f32.mrf.mxu0
    %v565 = vadd.f32 0.0, %v564
    %v566 = vpop.f32.mrf.mxu0
    %567 = vmatprep.mubr.bf16.mxu0 0
    %568 = vmatmul.mubr.bf16.gmra.mxu0 %v339
    %v569 = vpop.f32.mrf.mxu0
    %v570 = vadd.f32 0.0, %v569
    %v571 = vpop.f32.mrf.mxu0
    %v572 = vpop.f32.mrf.mxu0
    %v573 = vadd.f32 0.0, %v572
    %v574 = vpop.f32.mrf.mxu0
    %575 = vmatprep.mubr.bf16.mxu0 0
    %576 = vmatmul.mubr.bf16.gmra.mxu0 %v342
    %v577 = vpop.f32.mrf.mxu0
    %v578 = vadd.f32 0.0, %v577
    %v579 = vpop.f32.mrf.mxu0
    %v580 = vpop.f32.mrf.mxu0
    %v581 = vadd.f32 0.0, %v580
    %v582 = vpop.f32.mrf.mxu0
    %583 = vmatprep.mubr.bf16.mxu0 0
    %584 = vmatmul.mubr.bf16.gmra.mxu0 %v345
    %v585 = vpop.f32.mrf.mxu0
    %v586 = vadd.f32 0.0, %v585
    %v587 = vpop.f32.mrf.mxu0
    %v588 = vpop.f32.mrf.mxu0
    %v589 = vadd.f32 0.0, %v588
    %v590 = vpop.f32.mrf.mxu0
    %591 = vmatprep.mubr.bf16.mxu0 0
    %592 = vmatmul.mubr.bf16.gmra.mxu0 %v348
    %v593 = vpop.f32.mrf.mxu0
    %v594 = vadd.f32 0.0, %v593
    %v595 = vpop.f32.mrf.mxu0
    %v596 = vpop.f32.mrf.mxu0
    %v597 = vadd.f32 0.0, %v596
    %v598 = vpop.f32.mrf.mxu0
    %599 = vmatprep.mubr.bf16.mxu0 0
    %600 = vmatmul.mubr.bf16.gmra.mxu0 %v351
    %v601 = vpop.f32.mrf.mxu0
    %v602 = vadd.f32 0.0, %v601
    %v603 = vpop.f32.mrf.mxu0
    %v604 = vpop.f32.mrf.mxu0
    %v605 = vadd.f32 0.0, %v604
    %v606 = vpop.f32.mrf.mxu0
    %607 = vmatprep.mubr.bf16.mxu0 0
    %608 = vmatmul.mubr.bf16.gmra.mxu0 %v354
    %v609 = vpop.f32.mrf.mxu0
    %v610 = vadd.f32 0.0, %v609
    %v611 = vpop.f32.mrf.mxu0
    %v612 = vpop.f32.mrf.mxu0
    %v613 = vadd.f32 0.0, %v612
    %v614 = vpop.f32.mrf.mxu0
    %615 = vmatprep.mubr.bf16.mxu0 0
    %616 = vmatmul.mubr.bf16.gmra.mxu0 %v357
    %v617 = vpop.f32.mrf.mxu0
    %v618 = vadd.f32 0.0, %v617
    %v619 = vpop.f32.mrf.mxu0
    %v620 = vpop.f32.mrf.mxu0
    %v621 = vadd.f32 0.0, %v620
    %v622 = vpop.f32.mrf.mxu0
    %623 = vmatprep.mubr.bf16.mxu0 0
    %624 = vmatmul.mubr.bf16.gmra.mxu0 %v360
    %v625 = vpop.f32.mrf.mxu0
    %v626 = vadd.f32 0.0, %v625
    %v627 = vpop.f32.mrf.mxu0
    %v628 = vpop.f32.mrf.mxu0
    %v629 = vadd.f32 0.0, %v628
    %v630 = vpop.f32.mrf.mxu0
    %631 = vmatprep.mubr.bf16.mxu0 0
    %632 = vmatmul.mubr.bf16.gmra.mxu0 %v363
    %v633 = vpop.f32.mrf.mxu0
    %v634 = vadd.f32 0.0, %v633
    %v635 = vpop.f32.mrf.mxu0
    %v636 = vpop.f32.mrf.mxu0
    %v637 = vadd.f32 0.0, %v636
    %v638 = vpop.f32.mrf.mxu0
    %639 = vmatprep.mubr.bf16.mxu0 0
    %640 = vmatmul.mubr.bf16.gmra.mxu0 %v366
    %v641 = vpop.f32.mrf.mxu0
    %v642 = vadd.f32 0.0, %v641
    %v643 = vpop.f32.mrf.mxu0
    %v644 = vpop.f32.mrf.mxu0
    %v645 = vadd.f32 0.0, %v644
    %v646 = vpop.f32.mrf.mxu0
    %647 = vmatprep.mubr.bf16.mxu0 0
    %648 = vmatmul.mubr.bf16.gmra.mxu0 %v369
    %v649 = vpop.f32.mrf.mxu0
    %v650 = vadd.f32 0.0, %v649
    %v651 = vpop.f32.mrf.mxu0
    %v652 = vpop.f32.mrf.mxu0
    %v653 = vadd.f32 0.0, %v652
    %v654 = vpop.f32.mrf.mxu0
    %655 = vmatprep.mubr.bf16.mxu0 0
    %656 = vmatmul.mubr.bf16.gmra.mxu0 %v372
    %v657 = vpop.f32.mrf.mxu0
    %v658 = vadd.f32 0.0, %v657
    %v659 = vpop.f32.mrf.mxu0
    %v660 = vpop.f32.mrf.mxu0
    %v661 = vadd.f32 0.0, %v660
    %v662 = vpop.f32.mrf.mxu0
    %663 = vmatprep.mubr.bf16.mxu0 0
    %664 = vmatmul.mubr.bf16.gmra.mxu0 %v375
    %v665 = vpop.f32.mrf.mxu0
    %v666 = vadd.f32 0.0, %v665
    %v667 = vpop.f32.mrf.mxu0
    %v668 = vpop.f32.mrf.mxu0
    %v669 = vadd.f32 0.0, %v668
    %v670 = vpop.f32.mrf.mxu0
    %671 = vmatprep.mubr.bf16.mxu0 0
    %672 = vmatmul.mubr.bf16.gmra.mxu0 %v378
    %v673 = vpop.f32.mrf.mxu0
    %v674 = vadd.f32 0.0, %v673
    %v675 = vpop.f32.mrf.mxu0
    %v676 = vpop.f32.mrf.mxu0
    %v677 = vadd.f32 0.0, %v676
    %v678 = vpop.f32.mrf.mxu0
    %679 = vmatprep.mubr.bf16.mxu0 0
    %680 = vmatmul.mubr.bf16.gmra.mxu0 %v381
    %v681 = vpop.f32.mrf.mxu0
    %v682 = vadd.f32 0.0, %v681
    %v683 = vpop.f32.mrf.mxu0
    %v684 = vpop.f32.mrf.mxu0
    %v685 = vadd.f32 0.0, %v684
    %v686 = vpop.f32.mrf.mxu0
    %687 = vmatprep.mubr.bf16.mxu0 0
    %688 = vmatmul.mubr.bf16.gmra.mxu0 %v384
    %v689 = vpop.f32.mrf.mxu0
    %v690 = vadd.f32 0.0, %v689
    %v691 = vpop.f32.mrf.mxu0
    %v692 = vpop.f32.mrf.mxu0
    %v693 = vadd.f32 0.0, %v692
    %v694 = vpop.f32.mrf.mxu0
    %695 = vmatprep.mubr.bf16.mxu0 0
    %696 = vmatmul.mubr.bf16.gmra.mxu0 %v387
    %v697 = vpop.f32.mrf.mxu0
    %v698 = vadd.f32 0.0, %v697
    %v699 = vpop.f32.mrf.mxu0
    %v700 = vpop.f32.mrf.mxu0
    %v701 = vadd.f32 0.0, %v700
    %v702 = vpop.f32.mrf.mxu0
    %703 = vmatprep.mubr.bf16.mxu0 0
    %704 = vmatmul.mubr.bf16.gmra.mxu0 %v390
    %v705 = vpop.f32.mrf.mxu0
    %v706 = vadd.f32 0.0, %v705
    %v707 = vpop.f32.mrf.mxu0
    %v708 = vpop.f32.mrf.mxu0
    %v709 = vadd.f32 0.0, %v708
    %v710 = vpop.f32.mrf.mxu0
    %711 = vmatprep.mubr.bf16.mxu0 0
    %712 = vmatmul.mubr.bf16.gmra.mxu0 %v393
    %v713 = vpop.f32.mrf.mxu0
    %v714 = vadd.f32 0.0, %v713
    %v715 = vpop.f32.mrf.mxu0
    %v716 = vpop.f32.mrf.mxu0
    %v717 = vadd.f32 0.0, %v716
    %v718 = vpop.f32.mrf.mxu0
    %719 = vdwg.mxu0
    %v722 = vunpack.c.l.b16 %v22
    %v723 = vunpack.c.l.b16 %v23
    %v724 = vpack.c.b16 %v723, %v722
    %v727 = vunpack.c.l.b16 %v94
    %v728 = vunpack.c.l.b16 %v95
    %v729 = vpack.c.b16 %v728, %v727
    %v731 = vsel %vm286, %v724, 0
    %v734 = vsel %vm395, %v729, 0
    %736 = vmatprep.subr.bf16.mxu0 0
    %737 = vmatpush1.bf16.msra.mxu0 0
    %738 = vmatprep.subr.bf16.mxu0 0
    %739 = vmatpush1.bf16.msra.mxu0 0
    %740 = vmatprep.subr.bf16.mxu0 0
    %741 = vmatpush1.bf16.msra.mxu0 0
    %742 = vmatprep.subr.bf16.mxu0 0
    %743 = vmatpush1.bf16.msra.mxu0 0
    %744 = vmatprep.subr.bf16.mxu0 0
    %745 = vmatpush1.bf16.msra.mxu0 0
    %746 = vmatprep.subr.bf16.mxu0 0
    %747 = vmatpush1.bf16.msra.mxu0 0
    %748 = vmatprep.subr.bf16.mxu0 0
    %749 = vmatpush1.bf16.msra.mxu0 0
    %750 = vmatprep.subr.bf16.mxu0 0
    %751 = vmatpush1.bf16.msra.mxu0 %v734
    %752 = vmatprep.subr.bf16.mxu0 0
    %753 = vmatpush2.bf16.msra.mxu0 0
    %754 = vmatprep.subr.bf16.mxu0 0
    %755 = vmatpush2.bf16.msra.mxu0 0
    %756 = vmatprep.subr.bf16.mxu0 0
    %757 = vmatpush2.bf16.msra.mxu0 0
    %758 = vmatprep.subr.bf16.mxu0 0
    %759 = vmatpush2.bf16.msra.mxu0 0
    %760 = vmatprep.subr.bf16.mxu0 0
    %761 = vmatpush2.bf16.msra.mxu0 0
    %762 = vmatprep.subr.bf16.mxu0 0
    %763 = vmatpush2.bf16.msra.mxu0 0
    %764 = vmatprep.subr.bf16.mxu0 0
    %765 = vmatpush2.bf16.msra.mxu0 0
    %766 = vmatprep.subr.bf16.mxu0 0
    %767 = vmatpush2.bf16.msra.mxu0 0
    %768 = vmatprep.mubr.bf16.mxu0 0
    %769 = vmatmul.mubr.bf16.gmra.mxu0 %v731
    %v770 = vpop.f32.mrf.mxu0
    %v771 = vadd.f32 %v434, %v770
    %v772 = vpop.f32.mrf.mxu0
    %v773 = vpop.f32.mrf.mxu0
    %v774 = vadd.f32 %v437, %v773
    %v775 = vpop.f32.mrf.mxu0
    %776 = vmatprep.mubr.bf16.mxu0 0
    %777 = vmatmul.mubr.bf16.gmra.mxu0 %v288
    %v778 = vpop.f32.mrf.mxu0
    %v779 = vadd.f32 %v442, %v778
    %v780 = vpop.f32.mrf.mxu0
    %v781 = vpop.f32.mrf.mxu0
    %v782 = vadd.f32 %v445, %v781
    %v783 = vpop.f32.mrf.mxu0
    %784 = vmatprep.mubr.bf16.mxu0 0
    %785 = vmatmul.mubr.bf16.gmra.mxu0 %v291
    %v786 = vpop.f32.mrf.mxu0
    %v787 = vadd.f32 %v450, %v786
    %v788 = vpop.f32.mrf.mxu0
    %v789 = vpop.f32.mrf.mxu0
    %v790 = vadd.f32 %v453, %v789
    %v791 = vpop.f32.mrf.mxu0
    %792 = vmatprep.mubr.bf16.mxu0 0
    %793 = vmatmul.mubr.bf16.gmra.mxu0 %v294
    %v794 = vpop.f32.mrf.mxu0
    %v795 = vadd.f32 %v458, %v794
    %v796 = vpop.f32.mrf.mxu0
    %v797 = vpop.f32.mrf.mxu0
    %v798 = vadd.f32 %v461, %v797
    %v799 = vpop.f32.mrf.mxu0
    %800 = vmatprep.mubr.bf16.mxu0 0
    %801 = vmatmul.mubr.bf16.gmra.mxu0 %v297
    %v802 = vpop.f32.mrf.mxu0
    %v803 = vadd.f32 %v466, %v802
    %v804 = vpop.f32.mrf.mxu0
    %v805 = vpop.f32.mrf.mxu0
    %v806 = vadd.f32 %v469, %v805
    %v807 = vpop.f32.mrf.mxu0
    %808 = vmatprep.mubr.bf16.mxu0 0
    %809 = vmatmul.mubr.bf16.gmra.mxu0 %v300
    %v810 = vpop.f32.mrf.mxu0
    %v811 = vadd.f32 %v474, %v810
    %v812 = vpop.f32.mrf.mxu0
    %v813 = vpop.f32.mrf.mxu0
    %v814 = vadd.f32 %v477, %v813
    %v815 = vpop.f32.mrf.mxu0
    %816 = vmatprep.mubr.bf16.mxu0 0
    %817 = vmatmul.mubr.bf16.gmra.mxu0 %v303
    %v818 = vpop.f32.mrf.mxu0
    %v819 = vadd.f32 %v482, %v818
    %v820 = vpop.f32.mrf.mxu0
    %v821 = vpop.f32.mrf.mxu0
    %v822 = vadd.f32 %v485, %v821
    %v823 = vpop.f32.mrf.mxu0
    %824 = vmatprep.mubr.bf16.mxu0 0
    %825 = vmatmul.mubr.bf16.gmra.mxu0 %v306
    %v826 = vpop.f32.mrf.mxu0
    %v827 = vadd.f32 %v490, %v826
    %v828 = vpop.f32.mrf.mxu0
    %v829 = vpop.f32.mrf.mxu0
    %v830 = vadd.f32 %v493, %v829
    %v831 = vpop.f32.mrf.mxu0
    %832 = vmatprep.mubr.bf16.mxu0 0
    %833 = vmatmul.mubr.bf16.gmra.mxu0 %v309
    %v834 = vpop.f32.mrf.mxu0
    %v835 = vadd.f32 %v498, %v834
    %v836 = vpop.f32.mrf.mxu0
    %v837 = vpop.f32.mrf.mxu0
    %v838 = vadd.f32 %v501, %v837
    %v839 = vpop.f32.mrf.mxu0
    %840 = vmatprep.mubr.bf16.mxu0 0
    %841 = vmatmul.mubr.bf16.gmra.mxu0 %v312
    %v842 = vpop.f32.mrf.mxu0
    %v843 = vadd.f32 %v506, %v842
    %v844 = vpop.f32.mrf.mxu0
    %v845 = vpop.f32.mrf.mxu0
    %v846 = vadd.f32 %v509, %v845
    %v847 = vpop.f32.mrf.mxu0
    %848 = vmatprep.mubr.bf16.mxu0 0
    %849 = vmatmul.mubr.bf16.gmra.mxu0 %v315
    %v850 = vpop.f32.mrf.mxu0
    %v851 = vadd.f32 %v514, %v850
    %v852 = vpop.f32.mrf.mxu0
    %v853 = vpop.f32.mrf.mxu0
    %v854 = vadd.f32 %v517, %v853
    %v855 = vpop.f32.mrf.mxu0
    %856 = vmatprep.mubr.bf16.mxu0 0
    %857 = vmatmul.mubr.bf16.gmra.mxu0 %v318
    %v858 = vpop.f32.mrf.mxu0
    %v859 = vadd.f32 %v522, %v858
    %v860 = vpop.f32.mrf.mxu0
    %v861 = vpop.f32.mrf.mxu0
    %v862 = vadd.f32 %v525, %v861
    %v863 = vpop.f32.mrf.mxu0
    %864 = vmatprep.mubr.bf16.mxu0 0
    %865 = vmatmul.mubr.bf16.gmra.mxu0 %v321
    %v866 = vpop.f32.mrf.mxu0
    %v867 = vadd.f32 %v530, %v866
    %v868 = vpop.f32.mrf.mxu0
    %v869 = vpop.f32.mrf.mxu0
    %v870 = vadd.f32 %v533, %v869
    %v871 = vpop.f32.mrf.mxu0
    %872 = vmatprep.mubr.bf16.mxu0 0
    %873 = vmatmul.mubr.bf16.gmra.mxu0 %v324
    %v874 = vpop.f32.mrf.mxu0
    %v875 = vadd.f32 %v538, %v874
    %v876 = vpop.f32.mrf.mxu0
    %v877 = vpop.f32.mrf.mxu0
    %v878 = vadd.f32 %v541, %v877
    %v879 = vpop.f32.mrf.mxu0
    %880 = vmatprep.mubr.bf16.mxu0 0
    %881 = vmatmul.mubr.bf16.gmra.mxu0 %v327
    %v882 = vpop.f32.mrf.mxu0
    %v883 = vadd.f32 %v546, %v882
    %v884 = vpop.f32.mrf.mxu0
    %v885 = vpop.f32.mrf.mxu0
    %v886 = vadd.f32 %v549, %v885
    %v887 = vpop.f32.mrf.mxu0
    %888 = vmatprep.mubr.bf16.mxu0 0
    %889 = vmatmul.mubr.bf16.gmra.mxu0 %v330
    %v890 = vpop.f32.mrf.mxu0
    %v891 = vadd.f32 %v554, %v890
    %v892 = vpop.f32.mrf.mxu0
    %v893 = vpop.f32.mrf.mxu0
    %v894 = vadd.f32 %v557, %v893
    %v895 = vpop.f32.mrf.mxu0
    %896 = vmatprep.mubr.bf16.mxu0 0
    %897 = vmatmul.mubr.bf16.gmra.mxu0 %v333
    %v898 = vpop.f32.mrf.mxu0
    %v899 = vadd.f32 %v562, %v898
    %v900 = vpop.f32.mrf.mxu0
    %v901 = vpop.f32.mrf.mxu0
    %v902 = vadd.f32 %v565, %v901
    %v903 = vpop.f32.mrf.mxu0
    %904 = vmatprep.mubr.bf16.mxu0 0
    %905 = vmatmul.mubr.bf16.gmra.mxu0 %v336
    %v906 = vpop.f32.mrf.mxu0
    %v907 = vadd.f32 %v570, %v906
    %v908 = vpop.f32.mrf.mxu0
    %v909 = vpop.f32.mrf.mxu0
    %v910 = vadd.f32 %v573, %v909
    %v911 = vpop.f32.mrf.mxu0
    %912 = vmatprep.mubr.bf16.mxu0 0
    %913 = vmatmul.mubr.bf16.gmra.mxu0 %v339
    %v914 = vpop.f32.mrf.mxu0
    %v915 = vadd.f32 %v578, %v914
    %v916 = vpop.f32.mrf.mxu0
    %v917 = vpop.f32.mrf.mxu0
    %v918 = vadd.f32 %v581, %v917
    %v919 = vpop.f32.mrf.mxu0
    %920 = vmatprep.mubr.bf16.mxu0 0
    %921 = vmatmul.mubr.bf16.gmra.mxu0 %v342
    %v922 = vpop.f32.mrf.mxu0
    %v923 = vadd.f32 %v586, %v922
    %v924 = vpop.f32.mrf.mxu0
    %v925 = vpop.f32.mrf.mxu0
    %v926 = vadd.f32 %v589, %v925
    %v927 = vpop.f32.mrf.mxu0
    %928 = vmatprep.mubr.bf16.mxu0 0
    %929 = vmatmul.mubr.bf16.gmra.mxu0 %v345
    %v930 = vpop.f32.mrf.mxu0
    %v931 = vadd.f32 %v594, %v930
    %v932 = vpop.f32.mrf.mxu0
    %v933 = vpop.f32.mrf.mxu0
    %v934 = vadd.f32 %v597, %v933
    %v935 = vpop.f32.mrf.mxu0
    %936 = vmatprep.mubr.bf16.mxu0 0
    %937 = vmatmul.mubr.bf16.gmra.mxu0 %v348
    %v938 = vpop.f32.mrf.mxu0
    %v939 = vadd.f32 %v602, %v938
    %v940 = vpop.f32.mrf.mxu0
    %v941 = vpop.f32.mrf.mxu0
    %v942 = vadd.f32 %v605, %v941
    %v943 = vpop.f32.mrf.mxu0
    %944 = vmatprep.mubr.bf16.mxu0 0
    %945 = vmatmul.mubr.bf16.gmra.mxu0 %v351
    %v946 = vpop.f32.mrf.mxu0
    %v947 = vadd.f32 %v610, %v946
    %v948 = vpop.f32.mrf.mxu0
    %v949 = vpop.f32.mrf.mxu0
    %v950 = vadd.f32 %v613, %v949
    %v951 = vpop.f32.mrf.mxu0
    %952 = vmatprep.mubr.bf16.mxu0 0
    %953 = vmatmul.mubr.bf16.gmra.mxu0 %v354
    %v954 = vpop.f32.mrf.mxu0
    %v955 = vadd.f32 %v618, %v954
    %v956 = vpop.f32.mrf.mxu0
    %v957 = vpop.f32.mrf.mxu0
    %v958 = vadd.f32 %v621, %v957
    %v959 = vpop.f32.mrf.mxu0
    %960 = vmatprep.mubr.bf16.mxu0 0
    %961 = vmatmul.mubr.bf16.gmra.mxu0 %v357
    %v962 = vpop.f32.mrf.mxu0
    %v963 = vadd.f32 %v626, %v962
    %v964 = vpop.f32.mrf.mxu0
    %v965 = vpop.f32.mrf.mxu0
    %v966 = vadd.f32 %v629, %v965
    %v967 = vpop.f32.mrf.mxu0
    %968 = vmatprep.mubr.bf16.mxu0 0
    %969 = vmatmul.mubr.bf16.gmra.mxu0 %v360
    %v970 = vpop.f32.mrf.mxu0
    %v971 = vadd.f32 %v634, %v970
    %v972 = vpop.f32.mrf.mxu0
    %v973 = vpop.f32.mrf.mxu0
    %v974 = vadd.f32 %v637, %v973
    %v975 = vpop.f32.mrf.mxu0
    %976 = vmatprep.mubr.bf16.mxu0 0
    %977 = vmatmul.mubr.bf16.gmra.mxu0 %v363
    %v978 = vpop.f32.mrf.mxu0
    %v979 = vadd.f32 %v642, %v978
    %v980 = vpop.f32.mrf.mxu0
    %v981 = vpop.f32.mrf.mxu0
    %v982 = vadd.f32 %v645, %v981
    %v983 = vpop.f32.mrf.mxu0
    %984 = vmatprep.mubr.bf16.mxu0 0
    %985 = vmatmul.mubr.bf16.gmra.mxu0 %v366
    %v986 = vpop.f32.mrf.mxu0
    %v987 = vadd.f32 %v650, %v986
    %v988 = vpop.f32.mrf.mxu0
    %v989 = vpop.f32.mrf.mxu0
    %v990 = vadd.f32 %v653, %v989
    %v991 = vpop.f32.mrf.mxu0
    %992 = vmatprep.mubr.bf16.mxu0 0
    %993 = vmatmul.mubr.bf16.gmra.mxu0 %v369
    %v994 = vpop.f32.mrf.mxu0
    %v995 = vadd.f32 %v658, %v994
    %v996 = vpop.f32.mrf.mxu0
    %v997 = vpop.f32.mrf.mxu0
    %v998 = vadd.f32 %v661, %v997
    %v999 = vpop.f32.mrf.mxu0
    %1000 = vmatprep.mubr.bf16.mxu0 0
    %1001 = vmatmul.mubr.bf16.gmra.mxu0 %v372
    %v1002 = vpop.f32.mrf.mxu0
    %v1003 = vadd.f32 %v666, %v1002
    %v1004 = vpop.f32.mrf.mxu0
    %v1005 = vpop.f32.mrf.mxu0
    %v1006 = vadd.f32 %v669, %v1005
    %v1007 = vpop.f32.mrf.mxu0
    %1008 = vmatprep.mubr.bf16.mxu0 0
    %1009 = vmatmul.mubr.bf16.gmra.mxu0 %v375
    %v1010 = vpop.f32.mrf.mxu0
    %v1011 = vadd.f32 %v674, %v1010
    %v1012 = vpop.f32.mrf.mxu0
    %v1013 = vpop.f32.mrf.mxu0
    %v1014 = vadd.f32 %v677, %v1013
    %v1015 = vpop.f32.mrf.mxu0
    %1016 = vmatprep.mubr.bf16.mxu0 0
    %1017 = vmatmul.mubr.bf16.gmra.mxu0 %v378
    %v1018 = vpop.f32.mrf.mxu0
    %v1019 = vadd.f32 %v682, %v1018
    %v1020 = vpop.f32.mrf.mxu0
    %v1021 = vpop.f32.mrf.mxu0
    %v1022 = vadd.f32 %v685, %v1021
    %v1023 = vpop.f32.mrf.mxu0
    %1024 = vmatprep.mubr.bf16.mxu0 0
    %1025 = vmatmul.mubr.bf16.gmra.mxu0 %v381
    %v1026 = vpop.f32.mrf.mxu0
    %v1027 = vadd.f32 %v690, %v1026
    %v1028 = vpop.f32.mrf.mxu0
    %v1029 = vpop.f32.mrf.mxu0
    %v1030 = vadd.f32 %v693, %v1029
    %v1031 = vpop.f32.mrf.mxu0
    %1032 = vmatprep.mubr.bf16.mxu0 0
    %1033 = vmatmul.mubr.bf16.gmra.mxu0 %v384
    %v1034 = vpop.f32.mrf.mxu0
    %v1035 = vadd.f32 %v698, %v1034
    %v1036 = vpop.f32.mrf.mxu0
    %v1037 = vpop.f32.mrf.mxu0
    %v1038 = vadd.f32 %v701, %v1037
    %v1039 = vpop.f32.mrf.mxu0
    %1040 = vmatprep.mubr.bf16.mxu0 0
    %1041 = vmatmul.mubr.bf16.gmra.mxu0 %v387
    %v1042 = vpop.f32.mrf.mxu0
    %v1043 = vadd.f32 %v706, %v1042
    %v1044 = vpop.f32.mrf.mxu0
    %v1045 = vpop.f32.mrf.mxu0
    %v1046 = vadd.f32 %v709, %v1045
    %v1047 = vpop.f32.mrf.mxu0
    %1048 = vmatprep.mubr.bf16.mxu0 0
    %1049 = vmatmul.mubr.bf16.gmra.mxu0 %v390
    %v1050 = vpop.f32.mrf.mxu0
    %v1051 = vadd.f32 %v714, %v1050
    %v1052 = vpop.f32.mrf.mxu0
    %v1053 = vpop.f32.mrf.mxu0
    %v1054 = vadd.f32 %v717, %v1053
    %v1055 = vpop.f32.mrf.mxu0
    %1056 = vdwg.mxu0
    %v1057 = vld [vmem:[%s0 + $0x10] sm:$0xf]
    %v1058 = vld [vmem:[%s0 + $0x14] sm:$0xf]
    %v1059 = vld [vmem:[%s0 + $0x18] sm:$0xf]
    %v1060 = vld [vmem:[%s0 + $0x1c] sm:$0xf]
    %v1061 = vld [vmem:[%s0 + $0x20] sm:$0xf]
    %v1062 = vld [vmem:[%s0 + $0x24] sm:$0xf]
    %v1063 = vld [vmem:[%s0 + $0x28] sm:$0xf]
    %v1064 = vld [vmem:[%s0 + $0x2c] sm:$0xf]
    %v1065 = vld [vmem:[%s0 + $0x30] sm:$0xf]
    %v1066 = vld [vmem:[%s0 + $0x34] sm:$0xf]
    %v1067 = vld [vmem:[%s0 + $0x38] sm:$0xf]
    %v1068 = vld [vmem:[%s0 + $0x3c] sm:$0xf]
    %v1069 = vld [vmem:[%s0 + $0x40] sm:$0xf]
    %v1070 = vld [vmem:[%s0 + $0x44] sm:$0xf]
    %v1071 = vld [vmem:[%s0 + $0x48] sm:$0xf]
    %v1072 = vld [vmem:[%s0 + $0x4c] sm:$0xf]
    %v1073 = vld [vmem:[%s0 + $0x50] sm:$0xf]
    %v1074 = vld [vmem:[%s0 + $0x54] sm:$0xf]
    %v1075 = vld [vmem:[%s0 + $0x58] sm:$0xf]
    %v1076 = vld [vmem:[%s0 + $0x5c] sm:$0xf]
    %v1077 = vld [vmem:[%s0 + $0x60] sm:$0xf]
    %v1078 = vld [vmem:[%s0 + $0x64] sm:$0xf]
    %v1079 = vld [vmem:[%s0 + $0x68] sm:$0xf]
    %v1080 = vld [vmem:[%s0 + $0x6c] sm:$0xf]
    %v1081 = vld [vmem:[%s0 + $0x70] sm:$0xf]
    %v1082 = vld [vmem:[%s0 + $0x74] sm:$0xf]
    %v1083 = vld [vmem:[%s0 + $0x78] sm:$0xf]
    %v1084 = vld [vmem:[%s0 + $0x7c] sm:$0xf]
    %v1085 = vld [vmem:[%s0 + $0x80] sm:$0xf]
    %v1086 = vld [vmem:[%s0 + $0x84] sm:$0xf]
    %v1087 = vld [vmem:[%s0 + $0x88] sm:$0xf]
    %v1088 = vld [vmem:[%s0 + $0x8c] sm:$0xf]
    %v1089 = vld [vmem:[%s0 + $0x90] sm:$0xf]
    %v1090 = vld [vmem:[%s0 + $0x94] sm:$0xf]
    %v1091 = vld [vmem:[%s0 + $0x98] sm:$0xf]
    %v1092 = vld [vmem:[%s0 + $0x9c] sm:$0xf]
    %v1093 = vld [vmem:[%s0 + $0xa0] sm:$0xf]
    %v1094 = vld [vmem:[%s0 + $0xa4] sm:$0xf]
    %v1095 = vld [vmem:[%s0 + $0xa8] sm:$0xf]
    %v1096 = vld [vmem:[%s0 + $0xac] sm:$0xf]
    %v1097 = vld [vmem:[%s0 + $0xb0] sm:$0xf]
    %v1098 = vld [vmem:[%s0 + $0xb4] sm:$0xf]
    %v1099 = vld [vmem:[%s0 + $0xb8] sm:$0xf]
    %v1100 = vld [vmem:[%s0 + $0xbc] sm:$0xf]
    %v1101 = vld [vmem:[%s0 + $0xc0] sm:$0xf]
    %v1102 = vld [vmem:[%s0 + $0xc4] sm:$0xf]
    %v1103 = vld [vmem:[%s0 + $0xc8] sm:$0xf]
    %v1104 = vld [vmem:[%s0 + $0xcc] sm:$0xf]
    %v1105 = vld [vmem:[%s0 + $0xd0] sm:$0xf]
    %v1106 = vld [vmem:[%s0 + $0xd4] sm:$0xf]
    %v1107 = vld [vmem:[%s0 + $0xd8] sm:$0xf]
    %v1108 = vld [vmem:[%s0 + $0xdc] sm:$0xf]
    %v1109 = vld [vmem:[%s0 + $0xe0] sm:$0xf]
    %v1110 = vld [vmem:[%s0 + $0xe4] sm:$0xf]
    %v1111 = vld [vmem:[%s0 + $0xe8] sm:$0xf]
    %v1112 = vld [vmem:[%s0 + $0xec] sm:$0xf]
    %v1113 = vld [vmem:[%s0 + $0xf0] sm:$0xf]
    %v1114 = vld [vmem:[%s0 + $0xf4] sm:$0xf]
    %v1115 = vld [vmem:[%s0 + $0xf8] sm:$0xf]
    %v1116 = vld [vmem:[%s0 + $0xfc] sm:$0xf]
    %v1117 = vld [vmem:[%s0 + $0x100] sm:$0xf]
    %v1118 = vld [vmem:[%s0 + $0x104] sm:$0xf]
    %v1119 = vld [vmem:[%s0 + $0x108] sm:$0xf]
    %v1120 = vld [vmem:[%s0 + $0x10c] sm:$0xf]
    %v1121 = vld [vmem:[%s0 + $0x110] sm:$0xf]
    %v1122 = vld [vmem:[%s0 + $0x114] sm:$0xf]
    %v1123 = vld [vmem:[%s0 + $0x118] sm:$0xf]
    %v1124 = vld [vmem:[%s0 + $0x11c] sm:$0xf]
    %v1125 = vld [vmem:[%s0 + $0x120] sm:$0xf]
    %v1126 = vld [vmem:[%s0 + $0x124] sm:$0xf]
    %v1127 = vld [vmem:[%s0 + $0x128] sm:$0xf]
    %v1128 = vld [vmem:[%s0 + $0x12c] sm:$0xf]
    %s1129 = scalar_lea.vmem %s1, 16
    %v1130 = vld [vmem:[%s1129] sm:$0xf]
    %v1131 = vld [vmem:[%s1129 + $0x4] sm:$0x3]
    %v1204 = vunpack.c.l.b16 %v1057
    %v1205 = vunpack.c.l.b16 %v1058
    %v1206 = vunpack.c.l.b16 %v1059
    %v1207 = vunpack.c.l.b16 %v1060
    %v1208 = vunpack.c.l.b16 %v1061
    %v1209 = vunpack.c.l.b16 %v1062
    %v1210 = vunpack.c.l.b16 %v1063
    %v1211 = vunpack.c.l.b16 %v1064
    %v1212 = vunpack.c.l.b16 %v1065
    %v1213 = vunpack.c.l.b16 %v1066
    %v1214 = vunpack.c.l.b16 %v1067
    %v1215 = vunpack.c.l.b16 %v1068
    %v1216 = vunpack.c.l.b16 %v1069
    %v1217 = vunpack.c.l.b16 %v1070
    %v1218 = vunpack.c.l.b16 %v1071
    %v1219 = vunpack.c.l.b16 %v1072
    %v1220 = vunpack.c.l.b16 %v1073
    %v1221 = vunpack.c.l.b16 %v1074
    %v1222 = vunpack.c.l.b16 %v1075
    %v1223 = vunpack.c.l.b16 %v1076
    %v1224 = vunpack.c.l.b16 %v1077
    %v1225 = vunpack.c.l.b16 %v1078
    %v1226 = vunpack.c.l.b16 %v1079
    %v1227 = vunpack.c.l.b16 %v1080
    %v1228 = vunpack.c.l.b16 %v1081
    %v1229 = vunpack.c.l.b16 %v1082
    %v1230 = vunpack.c.l.b16 %v1083
    %v1231 = vunpack.c.l.b16 %v1084
    %v1232 = vunpack.c.l.b16 %v1085
    %v1233 = vunpack.c.l.b16 %v1086
    %v1234 = vunpack.c.l.b16 %v1087
    %v1235 = vunpack.c.l.b16 %v1088
    %v1236 = vunpack.c.l.b16 %v1089
    %v1237 = vunpack.c.l.b16 %v1090
    %v1238 = vunpack.c.l.b16 %v1091
    %v1239 = vunpack.c.l.b16 %v1092
    %v1240 = vunpack.c.l.b16 %v1093
    %v1241 = vunpack.c.l.b16 %v1094
    %v1242 = vunpack.c.l.b16 %v1095
    %v1243 = vunpack.c.l.b16 %v1096
    %v1244 = vunpack.c.l.b16 %v1097
    %v1245 = vunpack.c.l.b16 %v1098
    %v1246 = vunpack.c.l.b16 %v1099
    %v1247 = vunpack.c.l.b16 %v1100
    %v1248 = vunpack.c.l.b16 %v1101
    %v1249 = vunpack.c.l.b16 %v1102
    %v1250 = vunpack.c.l.b16 %v1103
    %v1251 = vunpack.c.l.b16 %v1104
    %v1252 = vunpack.c.l.b16 %v1105
    %v1253 = vunpack.c.l.b16 %v1106
    %v1254 = vunpack.c.l.b16 %v1107
    %v1255 = vunpack.c.l.b16 %v1108
    %v1256 = vunpack.c.l.b16 %v1109
    %v1257 = vunpack.c.l.b16 %v1110
    %v1258 = vunpack.c.l.b16 %v1111
    %v1259 = vunpack.c.l.b16 %v1112
    %v1260 = vunpack.c.l.b16 %v1113
    %v1261 = vunpack.c.l.b16 %v1114
    %v1262 = vunpack.c.l.b16 %v1115
    %v1263 = vunpack.c.l.b16 %v1116
    %v1264 = vunpack.c.l.b16 %v1117
    %v1265 = vunpack.c.l.b16 %v1118
    %v1266 = vunpack.c.l.b16 %v1119
    %v1267 = vunpack.c.l.b16 %v1120
    %v1268 = vunpack.c.l.b16 %v1121
    %v1269 = vunpack.c.l.b16 %v1122
    %v1270 = vunpack.c.l.b16 %v1123
    %v1271 = vunpack.c.l.b16 %v1124
    %v1272 = vunpack.c.l.b16 %v1125
    %v1273 = vunpack.c.l.b16 %v1126
    %v1274 = vunpack.c.l.b16 %v1127
    %v1275 = vunpack.c.l.b16 %v1128
    %v1276 = vpack.c.b16 %v1205, %v1204
    %v1277 = vpack.c.b16 %v1207, %v1206
    %v1278 = vpack.c.b16 %v1209, %v1208
    %v1279 = vpack.c.b16 %v1211, %v1210
    %v1280 = vpack.c.b16 %v1213, %v1212
    %v1281 = vpack.c.b16 %v1215, %v1214
    %v1282 = vpack.c.b16 %v1217, %v1216
    %v1283 = vpack.c.b16 %v1219, %v1218
    %v1284 = vpack.c.b16 %v1221, %v1220
    %v1285 = vpack.c.b16 %v1223, %v1222
    %v1286 = vpack.c.b16 %v1225, %v1224
    %v1287 = vpack.c.b16 %v1227, %v1226
    %v1288 = vpack.c.b16 %v1229, %v1228
    %v1289 = vpack.c.b16 %v1231, %v1230
    %v1290 = vpack.c.b16 %v1233, %v1232
    %v1291 = vpack.c.b16 %v1235, %v1234
    %v1292 = vpack.c.b16 %v1237, %v1236
    %v1293 = vpack.c.b16 %v1239, %v1238
    %v1294 = vpack.c.b16 %v1241, %v1240
    %v1295 = vpack.c.b16 %v1243, %v1242
    %v1296 = vpack.c.b16 %v1245, %v1244
    %v1297 = vpack.c.b16 %v1247, %v1246
    %v1298 = vpack.c.b16 %v1249, %v1248
    %v1299 = vpack.c.b16 %v1251, %v1250
    %v1300 = vpack.c.b16 %v1253, %v1252
    %v1301 = vpack.c.b16 %v1255, %v1254
    %v1302 = vpack.c.b16 %v1257, %v1256
    %v1303 = vpack.c.b16 %v1259, %v1258
    %v1304 = vpack.c.b16 %v1261, %v1260
    %v1305 = vpack.c.b16 %v1263, %v1262
    %v1306 = vpack.c.b16 %v1265, %v1264
    %v1307 = vpack.c.b16 %v1267, %v1266
    %v1308 = vpack.c.b16 %v1269, %v1268
    %v1309 = vpack.c.b16 %v1271, %v1270
    %v1310 = vpack.c.b16 %v1273, %v1272
    %v1311 = vpack.c.b16 %v1275, %v1274
    %v1314 = vunpack.c.l.b16 %v1130
    %v1315 = vunpack.c.l.b16 %v1131
    %v1316 = vpack.c.b16 %v1315, %v1314
    %v1318 = vsel %vm286, %v1276, 0
    %v1321 = vsel %vm286, %v1277, 0
    %v1324 = vsel %vm286, %v1278, 0
    %v1327 = vsel %vm286, %v1279, 0
    %v1330 = vsel %vm286, %v1280, 0
    %v1333 = vsel %vm286, %v1281, 0
    %v1336 = vsel %vm286, %v1282, 0
    %v1339 = vsel %vm286, %v1283, 0
    %v1342 = vsel %vm286, %v1284, 0
    %v1345 = vsel %vm286, %v1285, 0
    %v1348 = vsel %vm286, %v1286, 0
    %v1351 = vsel %vm286, %v1287, 0
    %v1354 = vsel %vm286, %v1288, 0
    %v1357 = vsel %vm286, %v1289, 0
    %v1360 = vsel %vm286, %v1290, 0
    %v1363 = vsel %vm286, %v1291, 0
    %v1366 = vsel %vm286, %v1292, 0
    %v1369 = vsel %vm286, %v1293, 0
    %v1372 = vsel %vm286, %v1294, 0
    %v1375 = vsel %vm286, %v1295, 0
    %v1378 = vsel %vm286, %v1296, 0
    %v1381 = vsel %vm286, %v1297, 0
    %v1384 = vsel %vm286, %v1298, 0
    %v1387 = vsel %vm286, %v1299, 0
    %v1390 = vsel %vm286, %v1300, 0
    %v1393 = vsel %vm286, %v1301, 0
    %v1396 = vsel %vm286, %v1302, 0
    %v1399 = vsel %vm286, %v1303, 0
    %v1402 = vsel %vm286, %v1304, 0
    %v1405 = vsel %vm286, %v1305, 0
    %v1408 = vsel %vm286, %v1306, 0
    %v1411 = vsel %vm286, %v1307, 0
    %v1414 = vsel %vm286, %v1308, 0
    %v1417 = vsel %vm286, %v1309, 0
    %v1420 = vsel %vm286, %v1310, 0
    %v1423 = vsel %vm286, %v1311, 0
    %v1426 = vsel %vm395, %v1316, 0
    %1428 = vmatprep.subr.bf16.mxu0 0
    %1429 = vmatpush1.bf16.msra.mxu0 0
    %1430 = vmatprep.subr.bf16.mxu0 0
    %1431 = vmatpush1.bf16.msra.mxu0 0
    %1432 = vmatprep.subr.bf16.mxu0 0
    %1433 = vmatpush1.bf16.msra.mxu0 0
    %1434 = vmatprep.subr.bf16.mxu0 0
    %1435 = vmatpush1.bf16.msra.mxu0 0
    %1436 = vmatprep.subr.bf16.mxu0 0
    %1437 = vmatpush1.bf16.msra.mxu0 0
    %1438 = vmatprep.subr.bf16.mxu0 0
    %1439 = vmatpush1.bf16.msra.mxu0 0
    %1440 = vmatprep.subr.bf16.mxu0 0
    %1441 = vmatpush1.bf16.msra.mxu0 0
    %1442 = vmatprep.subr.bf16.mxu0 0
    %1443 = vmatpush1.bf16.msra.mxu0 %v1426
    %1444 = vmatprep.subr.bf16.mxu0 0
    %1445 = vmatpush2.bf16.msra.mxu0 0
    %1446 = vmatprep.subr.bf16.mxu0 0
    %1447 = vmatpush2.bf16.msra.mxu0 0
    %1448 = vmatprep.subr.bf16.mxu0 0
    %1449 = vmatpush2.bf16.msra.mxu0 0
    %1450 = vmatprep.subr.bf16.mxu0 0
    %1451 = vmatpush2.bf16.msra.mxu0 0
    %1452 = vmatprep.subr.bf16.mxu0 0
    %1453 = vmatpush2.bf16.msra.mxu0 0
    %1454 = vmatprep.subr.bf16.mxu0 0
    %1455 = vmatpush2.bf16.msra.mxu0 0
    %1456 = vmatprep.subr.bf16.mxu0 0
    %1457 = vmatpush2.bf16.msra.mxu0 0
    %1458 = vmatprep.subr.bf16.mxu0 0
    %1459 = vmatpush2.bf16.msra.mxu0 0
    %1460 = vmatprep.mubr.bf16.mxu0 0
    %1461 = vmatmul.mubr.bf16.gmra.mxu0 %v1318
    %v1462 = vpop.f32.mrf.mxu0
    %v1463 = vadd.f32 0.0, %v1462
    %v1464 = vpop.f32.mrf.mxu0
    %v1465 = vpop.f32.mrf.mxu0
    %v1466 = vadd.f32 0.0, %v1465
    %v1467 = vpop.f32.mrf.mxu0
    %1468 = vmatprep.mubr.bf16.mxu0 0
    %1469 = vmatmul.mubr.bf16.gmra.mxu0 %v1321
    %v1470 = vpop.f32.mrf.mxu0
    %v1471 = vadd.f32 0.0, %v1470
    %v1472 = vpop.f32.mrf.mxu0
    %v1473 = vpop.f32.mrf.mxu0
    %v1474 = vadd.f32 0.0, %v1473
    %v1475 = vpop.f32.mrf.mxu0
    %1476 = vmatprep.mubr.bf16.mxu0 0
    %1477 = vmatmul.mubr.bf16.gmra.mxu0 %v1324
    %v1478 = vpop.f32.mrf.mxu0
    %v1479 = vadd.f32 0.0, %v1478
    %v1480 = vpop.f32.mrf.mxu0
    %v1481 = vpop.f32.mrf.mxu0
    %v1482 = vadd.f32 0.0, %v1481
    %v1483 = vpop.f32.mrf.mxu0
    %1484 = vmatprep.mubr.bf16.mxu0 0
    %1485 = vmatmul.mubr.bf16.gmra.mxu0 %v1327
    %v1486 = vpop.f32.mrf.mxu0
    %v1487 = vadd.f32 0.0, %v1486
    %v1488 = vpop.f32.mrf.mxu0
    %v1489 = vpop.f32.mrf.mxu0
    %v1490 = vadd.f32 0.0, %v1489
    %v1491 = vpop.f32.mrf.mxu0
    %1492 = vmatprep.mubr.bf16.mxu0 0
    %1493 = vmatmul.mubr.bf16.gmra.mxu0 %v1330
    %v1494 = vpop.f32.mrf.mxu0
    %v1495 = vadd.f32 0.0, %v1494
    %v1496 = vpop.f32.mrf.mxu0
    %v1497 = vpop.f32.mrf.mxu0
    %v1498 = vadd.f32 0.0, %v1497
    %v1499 = vpop.f32.mrf.mxu0
    %1500 = vmatprep.mubr.bf16.mxu0 0
    %1501 = vmatmul.mubr.bf16.gmra.mxu0 %v1333
    %v1502 = vpop.f32.mrf.mxu0
    %v1503 = vadd.f32 0.0, %v1502
    %v1504 = vpop.f32.mrf.mxu0
    %v1505 = vpop.f32.mrf.mxu0
    %v1506 = vadd.f32 0.0, %v1505
    %v1507 = vpop.f32.mrf.mxu0
    %1508 = vmatprep.mubr.bf16.mxu0 0
    %1509 = vmatmul.mubr.bf16.gmra.mxu0 %v1336
    %v1510 = vpop.f32.mrf.mxu0
    %v1511 = vadd.f32 0.0, %v1510
    %v1512 = vpop.f32.mrf.mxu0
    %v1513 = vpop.f32.mrf.mxu0
    %v1514 = vadd.f32 0.0, %v1513
    %v1515 = vpop.f32.mrf.mxu0
    %1516 = vmatprep.mubr.bf16.mxu0 0
    %1517 = vmatmul.mubr.bf16.gmra.mxu0 %v1339
    %v1518 = vpop.f32.mrf.mxu0
    %v1519 = vadd.f32 0.0, %v1518
    %v1520 = vpop.f32.mrf.mxu0
    %v1521 = vpop.f32.mrf.mxu0
    %v1522 = vadd.f32 0.0, %v1521
    %v1523 = vpop.f32.mrf.mxu0
    %1524 = vmatprep.mubr.bf16.mxu0 0
    %1525 = vmatmul.mubr.bf16.gmra.mxu0 %v1342
    %v1526 = vpop.f32.mrf.mxu0
    %v1527 = vadd.f32 0.0, %v1526
    %v1528 = vpop.f32.mrf.mxu0
    %v1529 = vpop.f32.mrf.mxu0
    %v1530 = vadd.f32 0.0, %v1529
    %v1531 = vpop.f32.mrf.mxu0
    %1532 = vmatprep.mubr.bf16.mxu0 0
    %1533 = vmatmul.mubr.bf16.gmra.mxu0 %v1345
    %v1534 = vpop.f32.mrf.mxu0
    %v1535 = vadd.f32 0.0, %v1534
    %v1536 = vpop.f32.mrf.mxu0
    %v1537 = vpop.f32.mrf.mxu0
    %v1538 = vadd.f32 0.0, %v1537
    %v1539 = vpop.f32.mrf.mxu0
    %1540 = vmatprep.mubr.bf16.mxu0 0
    %1541 = vmatmul.mubr.bf16.gmra.mxu0 %v1348
    %v1542 = vpop.f32.mrf.mxu0
    %v1543 = vadd.f32 0.0, %v1542
    %v1544 = vpop.f32.mrf.mxu0
    %v1545 = vpop.f32.mrf.mxu0
    %v1546 = vadd.f32 0.0, %v1545
    %v1547 = vpop.f32.mrf.mxu0
    %1548 = vmatprep.mubr.bf16.mxu0 0
    %1549 = vmatmul.mubr.bf16.gmra.mxu0 %v1351
    %v1550 = vpop.f32.mrf.mxu0
    %v1551 = vadd.f32 0.0, %v1550
    %v1552 = vpop.f32.mrf.mxu0
    %v1553 = vpop.f32.mrf.mxu0
    %v1554 = vadd.f32 0.0, %v1553
    %v1555 = vpop.f32.mrf.mxu0
    %1556 = vmatprep.mubr.bf16.mxu0 0
    %1557 = vmatmul.mubr.bf16.gmra.mxu0 %v1354
    %v1558 = vpop.f32.mrf.mxu0
    %v1559 = vadd.f32 0.0, %v1558
    %v1560 = vpop.f32.mrf.mxu0
    %v1561 = vpop.f32.mrf.mxu0
    %v1562 = vadd.f32 0.0, %v1561
    %v1563 = vpop.f32.mrf.mxu0
    %1564 = vmatprep.mubr.bf16.mxu0 0
    %1565 = vmatmul.mubr.bf16.gmra.mxu0 %v1357
    %v1566 = vpop.f32.mrf.mxu0
    %v1567 = vadd.f32 0.0, %v1566
    %v1568 = vpop.f32.mrf.mxu0
    %v1569 = vpop.f32.mrf.mxu0
    %v1570 = vadd.f32 0.0, %v1569
    %v1571 = vpop.f32.mrf.mxu0
    %1572 = vmatprep.mubr.bf16.mxu0 0
    %1573 = vmatmul.mubr.bf16.gmra.mxu0 %v1360
    %v1574 = vpop.f32.mrf.mxu0
    %v1575 = vadd.f32 0.0, %v1574
    %v1576 = vpop.f32.mrf.mxu0
    %v1577 = vpop.f32.mrf.mxu0
    %v1578 = vadd.f32 0.0, %v1577
    %v1579 = vpop.f32.mrf.mxu0
    %1580 = vmatprep.mubr.bf16.mxu0 0
    %1581 = vmatmul.mubr.bf16.gmra.mxu0 %v1363
    %v1582 = vpop.f32.mrf.mxu0
    %v1583 = vadd.f32 0.0, %v1582
    %v1584 = vpop.f32.mrf.mxu0
    %v1585 = vpop.f32.mrf.mxu0
    %v1586 = vadd.f32 0.0, %v1585
    %v1587 = vpop.f32.mrf.mxu0
    %1588 = vmatprep.mubr.bf16.mxu0 0
    %1589 = vmatmul.mubr.bf16.gmra.mxu0 %v1366
    %v1590 = vpop.f32.mrf.mxu0
    %v1591 = vadd.f32 0.0, %v1590
    %v1592 = vpop.f32.mrf.mxu0
    %v1593 = vpop.f32.mrf.mxu0
    %v1594 = vadd.f32 0.0, %v1593
    %v1595 = vpop.f32.mrf.mxu0
    %1596 = vmatprep.mubr.bf16.mxu0 0
    %1597 = vmatmul.mubr.bf16.gmra.mxu0 %v1369
    %v1598 = vpop.f32.mrf.mxu0
    %v1599 = vadd.f32 0.0, %v1598
    %v1600 = vpop.f32.mrf.mxu0
    %v1601 = vpop.f32.mrf.mxu0
    %v1602 = vadd.f32 0.0, %v1601
    %v1603 = vpop.f32.mrf.mxu0
    %1604 = vmatprep.mubr.bf16.mxu0 0
    %1605 = vmatmul.mubr.bf16.gmra.mxu0 %v1372
    %v1606 = vpop.f32.mrf.mxu0
    %v1607 = vadd.f32 0.0, %v1606
    %v1608 = vpop.f32.mrf.mxu0
    %v1609 = vpop.f32.mrf.mxu0
    %v1610 = vadd.f32 0.0, %v1609
    %v1611 = vpop.f32.mrf.mxu0
    %1612 = vmatprep.mubr.bf16.mxu0 0
    %1613 = vmatmul.mubr.bf16.gmra.mxu0 %v1375
    %v1614 = vpop.f32.mrf.mxu0
    %v1615 = vadd.f32 0.0, %v1614
    %v1616 = vpop.f32.mrf.mxu0
    %v1617 = vpop.f32.mrf.mxu0
    %v1618 = vadd.f32 0.0, %v1617
    %v1619 = vpop.f32.mrf.mxu0
    %1620 = vmatprep.mubr.bf16.mxu0 0
    %1621 = vmatmul.mubr.bf16.gmra.mxu0 %v1378
    %v1622 = vpop.f32.mrf.mxu0
    %v1623 = vadd.f32 0.0, %v1622
    %v1624 = vpop.f32.mrf.mxu0
    %v1625 = vpop.f32.mrf.mxu0
    %v1626 = vadd.f32 0.0, %v1625
    %v1627 = vpop.f32.mrf.mxu0
    %1628 = vmatprep.mubr.bf16.mxu0 0
    %1629 = vmatmul.mubr.bf16.gmra.mxu0 %v1381
    %v1630 = vpop.f32.mrf.mxu0
    %v1631 = vadd.f32 0.0, %v1630
    %v1632 = vpop.f32.mrf.mxu0
    %v1633 = vpop.f32.mrf.mxu0
    %v1634 = vadd.f32 0.0, %v1633
    %v1635 = vpop.f32.mrf.mxu0
    %1636 = vmatprep.mubr.bf16.mxu0 0
    %1637 = vmatmul.mubr.bf16.gmra.mxu0 %v1384
    %v1638 = vpop.f32.mrf.mxu0
    %v1639 = vadd.f32 0.0, %v1638
    %v1640 = vpop.f32.mrf.mxu0
    %v1641 = vpop.f32.mrf.mxu0
    %v1642 = vadd.f32 0.0, %v1641
    %v1643 = vpop.f32.mrf.mxu0
    %1644 = vmatprep.mubr.bf16.mxu0 0
    %1645 = vmatmul.mubr.bf16.gmra.mxu0 %v1387
    %v1646 = vpop.f32.mrf.mxu0
    %v1647 = vadd.f32 0.0, %v1646
    %v1648 = vpop.f32.mrf.mxu0
    %v1649 = vpop.f32.mrf.mxu0
    %v1650 = vadd.f32 0.0, %v1649
    %v1651 = vpop.f32.mrf.mxu0
    %1652 = vmatprep.mubr.bf16.mxu0 0
    %1653 = vmatmul.mubr.bf16.gmra.mxu0 %v1390
    %v1654 = vpop.f32.mrf.mxu0
    %v1655 = vadd.f32 0.0, %v1654
    %v1656 = vpop.f32.mrf.mxu0
    %v1657 = vpop.f32.mrf.mxu0
    %v1658 = vadd.f32 0.0, %v1657
    %v1659 = vpop.f32.mrf.mxu0
    %1660 = vmatprep.mubr.bf16.mxu0 0
    %1661 = vmatmul.mubr.bf16.gmra.mxu0 %v1393
    %v1662 = vpop.f32.mrf.mxu0
    %v1663 = vadd.f32 0.0, %v1662
    %v1664 = vpop.f32.mrf.mxu0
    %v1665 = vpop.f32.mrf.mxu0
    %v1666 = vadd.f32 0.0, %v1665
    %v1667 = vpop.f32.mrf.mxu0
    %1668 = vmatprep.mubr.bf16.mxu0 0
    %1669 = vmatmul.mubr.bf16.gmra.mxu0 %v1396
    %v1670 = vpop.f32.mrf.mxu0
    %v1671 = vadd.f32 0.0, %v1670
    %v1672 = vpop.f32.mrf.mxu0
    %v1673 = vpop.f32.mrf.mxu0
    %v1674 = vadd.f32 0.0, %v1673
    %v1675 = vpop.f32.mrf.mxu0
    %1676 = vmatprep.mubr.bf16.mxu0 0
    %1677 = vmatmul.mubr.bf16.gmra.mxu0 %v1399
    %v1678 = vpop.f32.mrf.mxu0
    %v1679 = vadd.f32 0.0, %v1678
    %v1680 = vpop.f32.mrf.mxu0
    %v1681 = vpop.f32.mrf.mxu0
    %v1682 = vadd.f32 0.0, %v1681
    %v1683 = vpop.f32.mrf.mxu0
    %1684 = vmatprep.mubr.bf16.mxu0 0
    %1685 = vmatmul.mubr.bf16.gmra.mxu0 %v1402
    %v1686 = vpop.f32.mrf.mxu0
    %v1687 = vadd.f32 0.0, %v1686
    %v1688 = vpop.f32.mrf.mxu0
    %v1689 = vpop.f32.mrf.mxu0
    %v1690 = vadd.f32 0.0, %v1689
    %v1691 = vpop.f32.mrf.mxu0
    %1692 = vmatprep.mubr.bf16.mxu0 0
    %1693 = vmatmul.mubr.bf16.gmra.mxu0 %v1405
    %v1694 = vpop.f32.mrf.mxu0
    %v1695 = vadd.f32 0.0, %v1694
    %v1696 = vpop.f32.mrf.mxu0
    %v1697 = vpop.f32.mrf.mxu0
    %v1698 = vadd.f32 0.0, %v1697
    %v1699 = vpop.f32.mrf.mxu0
    %1700 = vmatprep.mubr.bf16.mxu0 0
    %1701 = vmatmul.mubr.bf16.gmra.mxu0 %v1408
    %v1702 = vpop.f32.mrf.mxu0
    %v1703 = vadd.f32 0.0, %v1702
    %v1704 = vpop.f32.mrf.mxu0
    %v1705 = vpop.f32.mrf.mxu0
    %v1706 = vadd.f32 0.0, %v1705
    %v1707 = vpop.f32.mrf.mxu0
    %1708 = vmatprep.mubr.bf16.mxu0 0
    %1709 = vmatmul.mubr.bf16.gmra.mxu0 %v1411
    %v1710 = vpop.f32.mrf.mxu0
    %v1711 = vadd.f32 0.0, %v1710
    %v1712 = vpop.f32.mrf.mxu0
    %v1713 = vpop.f32.mrf.mxu0
    %v1714 = vadd.f32 0.0, %v1713
    %v1715 = vpop.f32.mrf.mxu0
    %1716 = vmatprep.mubr.bf16.mxu0 0
    %1717 = vmatmul.mubr.bf16.gmra.mxu0 %v1414
    %v1718 = vpop.f32.mrf.mxu0
    %v1719 = vadd.f32 0.0, %v1718
    %v1720 = vpop.f32.mrf.mxu0
    %v1721 = vpop.f32.mrf.mxu0
    %v1722 = vadd.f32 0.0, %v1721
    %v1723 = vpop.f32.mrf.mxu0
    %1724 = vmatprep.mubr.bf16.mxu0 0
    %1725 = vmatmul.mubr.bf16.gmra.mxu0 %v1417
    %v1726 = vpop.f32.mrf.mxu0
    %v1727 = vadd.f32 0.0, %v1726
    %v1728 = vpop.f32.mrf.mxu0
    %v1729 = vpop.f32.mrf.mxu0
    %v1730 = vadd.f32 0.0, %v1729
    %v1731 = vpop.f32.mrf.mxu0
    %1732 = vmatprep.mubr.bf16.mxu0 0
    %1733 = vmatmul.mubr.bf16.gmra.mxu0 %v1420
    %v1734 = vpop.f32.mrf.mxu0
    %v1735 = vadd.f32 0.0, %v1734
    %v1736 = vpop.f32.mrf.mxu0
    %v1737 = vpop.f32.mrf.mxu0
    %v1738 = vadd.f32 0.0, %v1737
    %v1739 = vpop.f32.mrf.mxu0
    %1740 = vmatprep.mubr.bf16.mxu0 0
    %1741 = vmatmul.mubr.bf16.gmra.mxu0 %v1423
    %v1742 = vpop.f32.mrf.mxu0
    %v1743 = vadd.f32 0.0, %v1742
    %v1744 = vpop.f32.mrf.mxu0
    %v1745 = vpop.f32.mrf.mxu0
    %v1746 = vadd.f32 0.0, %v1745
    %v1747 = vpop.f32.mrf.mxu0
    %1748 = vdwg.mxu0
    %v1749 = vadd.f32 %v771, %v1463
    %v1750 = vadd.f32 %v774, %v1466
    %v1751 = vadd.f32 %v779, %v1471
    %v1752 = vadd.f32 %v782, %v1474
    %v1753 = vadd.f32 %v787, %v1479
    %v1754 = vadd.f32 %v790, %v1482
    %v1755 = vadd.f32 %v795, %v1487
    %v1756 = vadd.f32 %v798, %v1490
    %v1757 = vadd.f32 %v803, %v1495
    %v1758 = vadd.f32 %v806, %v1498
    %v1759 = vadd.f32 %v811, %v1503
    %v1760 = vadd.f32 %v814, %v1506
    %v1761 = vadd.f32 %v819, %v1511
    %v1762 = vadd.f32 %v822, %v1514
    %v1763 = vadd.f32 %v827, %v1519
    %v1764 = vadd.f32 %v830, %v1522
    %v1765 = vadd.f32 %v835, %v1527
    %v1766 = vadd.f32 %v838, %v1530
    %v1767 = vadd.f32 %v843, %v1535
    %v1768 = vadd.f32 %v846, %v1538
    %v1769 = vadd.f32 %v851, %v1543
    %v1770 = vadd.f32 %v854, %v1546
    %v1771 = vadd.f32 %v859, %v1551
    %v1772 = vadd.f32 %v862, %v1554
    %v1773 = vadd.f32 %v867, %v1559
    %v1774 = vadd.f32 %v870, %v1562
    %v1775 = vadd.f32 %v875, %v1567
    %v1776 = vadd.f32 %v878, %v1570
    %v1777 = vadd.f32 %v883, %v1575
    %v1778 = vadd.f32 %v886, %v1578
    %v1779 = vadd.f32 %v891, %v1583
    %v1780 = vadd.f32 %v894, %v1586
    %v1781 = vadd.f32 %v899, %v1591
    %v1782 = vadd.f32 %v902, %v1594
    %v1783 = vadd.f32 %v907, %v1599
    %v1784 = vadd.f32 %v910, %v1602
    %v1785 = vadd.f32 %v915, %v1607
    %v1786 = vadd.f32 %v918, %v1610
    %v1787 = vadd.f32 %v923, %v1615
    %v1788 = vadd.f32 %v926, %v1618
    %v1789 = vadd.f32 %v931, %v1623
    %v1790 = vadd.f32 %v934, %v1626
    %v1791 = vadd.f32 %v939, %v1631
    %v1792 = vadd.f32 %v942, %v1634
    %v1793 = vadd.f32 %v947, %v1639
    %v1794 = vadd.f32 %v950, %v1642
    %v1795 = vadd.f32 %v955, %v1647
    %v1796 = vadd.f32 %v958, %v1650
    %v1797 = vadd.f32 %v963, %v1655
    %v1798 = vadd.f32 %v966, %v1658
    %v1799 = vadd.f32 %v971, %v1663
    %v1800 = vadd.f32 %v974, %v1666
    %v1801 = vadd.f32 %v979, %v1671
    %v1802 = vadd.f32 %v982, %v1674
    %v1803 = vadd.f32 %v987, %v1679
    %v1804 = vadd.f32 %v990, %v1682
    %v1805 = vadd.f32 %v995, %v1687
    %v1806 = vadd.f32 %v998, %v1690
    %v1807 = vadd.f32 %v1003, %v1695
    %v1808 = vadd.f32 %v1006, %v1698
    %v1809 = vadd.f32 %v1011, %v1703
    %v1810 = vadd.f32 %v1014, %v1706
    %v1811 = vadd.f32 %v1019, %v1711
    %v1812 = vadd.f32 %v1022, %v1714
    %v1813 = vadd.f32 %v1027, %v1719
    %v1814 = vadd.f32 %v1030, %v1722
    %v1815 = vadd.f32 %v1035, %v1727
    %v1816 = vadd.f32 %v1038, %v1730
    %v1817 = vadd.f32 %v1043, %v1735
    %v1818 = vadd.f32 %v1046, %v1738
    %v1819 = vadd.f32 %v1051, %v1743
    %v1820 = vadd.f32 %v1054, %v1746
    %v1821 = vld [vmem:[%s2] sm:$0x1]
    %v1823 = vlaneseq
    %v1824 = vshrl.u32 %v1823, 7
    %v1825 = vsub.s32 0, %v1824
    %v1826 = vrot.slane %v1821, %v1825
    %v1828 = vadd.f32 %v1749, %v1826
    %v1829 = vadd.f32 %v1750, %v1826
    %v1830 = vadd.f32 %v1751, %v1826
    %v1831 = vadd.f32 %v1752, %v1826
    %v1832 = vadd.f32 %v1753, %v1826
    %v1833 = vadd.f32 %v1754, %v1826
    %v1834 = vadd.f32 %v1755, %v1826
    %v1835 = vadd.f32 %v1756, %v1826
    %v1836 = vadd.f32 %v1757, %v1826
    %v1837 = vadd.f32 %v1758, %v1826
    %v1838 = vadd.f32 %v1759, %v1826
    %v1839 = vadd.f32 %v1760, %v1826
    %v1840 = vadd.f32 %v1761, %v1826
    %v1841 = vadd.f32 %v1762, %v1826
    %v1842 = vadd.f32 %v1763, %v1826
    %v1843 = vadd.f32 %v1764, %v1826
    %v1844 = vadd.f32 %v1765, %v1826
    %v1845 = vadd.f32 %v1766, %v1826
    %v1846 = vadd.f32 %v1767, %v1826
    %v1847 = vadd.f32 %v1768, %v1826
    %v1848 = vadd.f32 %v1769, %v1826
    %v1849 = vadd.f32 %v1770, %v1826
    %v1850 = vadd.f32 %v1771, %v1826
    %v1851 = vadd.f32 %v1772, %v1826
    %v1852 = vadd.f32 %v1773, %v1826
    %v1853 = vadd.f32 %v1774, %v1826
    %v1854 = vadd.f32 %v1775, %v1826
    %v1855 = vadd.f32 %v1776, %v1826
    %v1856 = vadd.f32 %v1777, %v1826
    %v1857 = vadd.f32 %v1778, %v1826
    %v1858 = vadd.f32 %v1779, %v1826
    %v1859 = vadd.f32 %v1780, %v1826
    %v1860 = vadd.f32 %v1781, %v1826
    %v1861 = vadd.f32 %v1782, %v1826
    %v1862 = vadd.f32 %v1783, %v1826
    %v1863 = vadd.f32 %v1784, %v1826
    %v1864 = vadd.f32 %v1785, %v1826
    %v1865 = vadd.f32 %v1786, %v1826
    %v1866 = vadd.f32 %v1787, %v1826
    %v1867 = vadd.f32 %v1788, %v1826
    %v1868 = vadd.f32 %v1789, %v1826
    %v1869 = vadd.f32 %v1790, %v1826
    %v1870 = vadd.f32 %v1791, %v1826
    %v1871 = vadd.f32 %v1792, %v1826
    %v1872 = vadd.f32 %v1793, %v1826
    %v1873 = vadd.f32 %v1794, %v1826
    %v1874 = vadd.f32 %v1795, %v1826
    %v1875 = vadd.f32 %v1796, %v1826
    %v1876 = vadd.f32 %v1797, %v1826
    %v1877 = vadd.f32 %v1798, %v1826
    %v1878 = vadd.f32 %v1799, %v1826
    %v1879 = vadd.f32 %v1800, %v1826
    %v1880 = vadd.f32 %v1801, %v1826
    %v1881 = vadd.f32 %v1802, %v1826
    %v1882 = vadd.f32 %v1803, %v1826
    %v1883 = vadd.f32 %v1804, %v1826
    %v1884 = vadd.f32 %v1805, %v1826
    %v1885 = vadd.f32 %v1806, %v1826
    %v1886 = vadd.f32 %v1807, %v1826
    %v1887 = vadd.f32 %v1808, %v1826
    %v1888 = vadd.f32 %v1809, %v1826
    %v1889 = vadd.f32 %v1810, %v1826
    %v1890 = vadd.f32 %v1811, %v1826
    %v1891 = vadd.f32 %v1812, %v1826
    %v1892 = vadd.f32 %v1813, %v1826
    %v1893 = vadd.f32 %v1814, %v1826
    %v1894 = vadd.f32 %v1815, %v1826
    %v1895 = vadd.f32 %v1816, %v1826
    %v1896 = vadd.f32 %v1817, %v1826
    %v1897 = vadd.f32 %v1818, %v1826
    %v1898 = vadd.f32 %v1819, %v1826
    %v1899 = vadd.f32 %v1820, %v1826
    %v1900 = vmax.f32 %v1828, 0.0
    %v1901 = vmax.f32 %v1829, 0.0
    %v1902 = vmax.f32 %v1830, 0.0
    %v1903 = vmax.f32 %v1831, 0.0
    %v1904 = vmax.f32 %v1832, 0.0
    %v1905 = vmax.f32 %v1833, 0.0
    %v1906 = vmax.f32 %v1834, 0.0
    %v1907 = vmax.f32 %v1835, 0.0
    %v1908 = vmax.f32 %v1836, 0.0
    %v1909 = vmax.f32 %v1837, 0.0
    %v1910 = vmax.f32 %v1838, 0.0
    %v1911 = vmax.f32 %v1839, 0.0
    %v1912 = vmax.f32 %v1840, 0.0
    %v1913 = vmax.f32 %v1841, 0.0
    %v1914 = vmax.f32 %v1842, 0.0
    %v1915 = vmax.f32 %v1843, 0.0
    %v1916 = vmax.f32 %v1844, 0.0
    %v1917 = vmax.f32 %v1845, 0.0
    %v1918 = vmax.f32 %v1846, 0.0
    %v1919 = vmax.f32 %v1847, 0.0
    %v1920 = vmax.f32 %v1848, 0.0
    %v1921 = vmax.f32 %v1849, 0.0
    %v1922 = vmax.f32 %v1850, 0.0
    %v1923 = vmax.f32 %v1851, 0.0
    %v1924 = vmax.f32 %v1852, 0.0
    %v1925 = vmax.f32 %v1853, 0.0
    %v1926 = vmax.f32 %v1854, 0.0
    %v1927 = vmax.f32 %v1855, 0.0
    %v1928 = vmax.f32 %v1856, 0.0
    %v1929 = vmax.f32 %v1857, 0.0
    %v1930 = vmax.f32 %v1858, 0.0
    %v1931 = vmax.f32 %v1859, 0.0
    %v1932 = vmax.f32 %v1860, 0.0
    %v1933 = vmax.f32 %v1861, 0.0
    %v1934 = vmax.f32 %v1862, 0.0
    %v1935 = vmax.f32 %v1863, 0.0
    %v1936 = vmax.f32 %v1864, 0.0
    %v1937 = vmax.f32 %v1865, 0.0
    %v1938 = vmax.f32 %v1866, 0.0
    %v1939 = vmax.f32 %v1867, 0.0
    %v1940 = vmax.f32 %v1868, 0.0
    %v1941 = vmax.f32 %v1869, 0.0
    %v1942 = vmax.f32 %v1870, 0.0
    %v1943 = vmax.f32 %v1871, 0.0
    %v1944 = vmax.f32 %v1872, 0.0
    %v1945 = vmax.f32 %v1873, 0.0
    %v1946 = vmax.f32 %v1874, 0.0
    %v1947 = vmax.f32 %v1875, 0.0
    %v1948 = vmax.f32 %v1876, 0.0
    %v1949 = vmax.f32 %v1877, 0.0
    %v1950 = vmax.f32 %v1878, 0.0
    %v1951 = vmax.f32 %v1879, 0.0
    %v1952 = vmax.f32 %v1880, 0.0
    %v1953 = vmax.f32 %v1881, 0.0
    %v1954 = vmax.f32 %v1882, 0.0
    %v1955 = vmax.f32 %v1883, 0.0
    %v1956 = vmax.f32 %v1884, 0.0
    %v1957 = vmax.f32 %v1885, 0.0
    %v1958 = vmax.f32 %v1886, 0.0
    %v1959 = vmax.f32 %v1887, 0.0
    %v1960 = vmax.f32 %v1888, 0.0
    %v1961 = vmax.f32 %v1889, 0.0
    %v1962 = vmax.f32 %v1890, 0.0
    %v1963 = vmax.f32 %v1891, 0.0
    %v1964 = vmax.f32 %v1892, 0.0
    %v1965 = vmax.f32 %v1893, 0.0
    %v1966 = vmax.f32 %v1894, 0.0
    %v1967 = vmax.f32 %v1895, 0.0
    %v1968 = vmax.f32 %v1896, 0.0
    %v1969 = vmax.f32 %v1897, 0.0
    %v1970 = vmax.f32 %v1898, 0.0
    %v1971 = vmax.f32 %v1899, 0.0
    %v1972 = vlaneseq
    %v1973 = vand.u32 %v1972, 127
    %v1974 = vadd.s32 %v1973, 128
    %v1975 = vadd.s32 %v1973, 256
    %v1976 = vadd.s32 %v1973, 384
    %v1977 = vadd.s32 %v1973, 512
    %v1978 = vlaneseq
    %v1979 = vshrl.u32 %v1978, 7
    %v1980 = vmul.u32 %v1979, 288
    %v1981 = vsub.s32 %v1973, %v1980
    %v1982 = vsub.s32 %v1974, %v1980
    %v1983 = vsub.s32 %v1975, %v1980
    %v1984 = vsub.s32 %v1976, %v1980
    %v1985 = vsub.s32 %v1977, %v1980
    %vm1986 = vcmp.ge.s32.totalorder %v1981, 16
    %vm1987 = vcmp.ge.s32.totalorder %v1982, 16
    %vm1988 = vcmp.ge.s32.totalorder %v1983, 16
    %vm1989 = vcmp.ge.s32.totalorder %v1984, 16
    %vm1990 = vcmp.ge.s32.totalorder %v1985, 16
    %vm1991 = vcmp.lt.s32.totalorder %v1981, 272
    %vm1992 = vcmp.lt.s32.totalorder %v1982, 272
    %vm1993 = vcmp.lt.s32.totalorder %v1983, 272
    %vm1994 = vcmp.lt.s32.totalorder %v1984, 272
    %vm1995 = vcmp.lt.s32.totalorder %v1985, 272
    %vm1996 = vmand %vm1986, %vm1991
    %vm1997 = vmand %vm1987, %vm1992
    %vm1998 = vmand %vm1988, %vm1993
    %vm1999 = vmand %vm1989, %vm1994
    %vm2000 = vmand %vm1990, %vm1995
    %v2001 = vsel %vm1996, 0.00390625, 0.0
    %v2002 = vsel %vm1997, 0.00390625, 0.0
    %v2003 = vsel %vm1998, 0.00390625, 0.0
    %v2004 = vsel %vm1999, 0.00390625, 0.0
    %v2005 = vsel %vm2000, 0.00390625, 0.0
    %vm2006 = vcmask 523264
    %v2008 = vsel %vm2006, %v2005, 0
    %2010 = vmatprep.subr.mxu0 0.0
    %2011 = vmatpush1.msra.mxu0 %v1915
    %2012 = vmatprep.subr.mxu0 0.0
    %2013 = vmatpush1.msra.mxu0 %v1914
    %2014 = vmatprep.subr.mxu0 0.0
    %2015 = vmatpush1.msra.mxu0 %v1913
    %2016 = vmatprep.subr.mxu0 0.0
    %2017 = vmatpush1.msra.mxu0 %v1912
    %2018 = vmatprep.subr.mxu0 0.0
    %2019 = vmatpush1.msra.mxu0 %v1911
    %2020 = vmatprep.subr.mxu0 0.0
    %2021 = vmatpush1.msra.mxu0 %v1910
    %2022 = vmatprep.subr.mxu0 0.0
    %2023 = vmatpush1.msra.mxu0 %v1909
    %2024 = vmatprep.subr.mxu0 0.0
    %2025 = vmatpush1.msra.mxu0 %v1908
    %2026 = vmatprep.subr.mxu0 0.0
    %2027 = vmatpush1.msra.mxu0 %v1907
    %2028 = vmatprep.subr.mxu0 0.0
    %2029 = vmatpush1.msra.mxu0 %v1906
    %2030 = vmatprep.subr.mxu0 0.0
    %2031 = vmatpush1.msra.mxu0 %v1905
    %2032 = vmatprep.subr.mxu0 0.0
    %2033 = vmatpush1.msra.mxu0 %v1904
    %2034 = vmatprep.subr.mxu0 0.0
    %2035 = vmatpush1.msra.mxu0 %v1903
    %2036 = vmatprep.subr.mxu0 0.0
    %2037 = vmatpush1.msra.mxu0 %v1902
    %2038 = vmatprep.subr.mxu0 0.0
    %2039 = vmatpush1.msra.mxu0 %v1901
    %2040 = vmatprep.subr.mxu0 0.0
    %2041 = vmatpush1.msra.mxu0 %v1900
    %2042 = vmatprep.subr.mxu0 0.0
    %2043 = vmatpush2.msra.mxu0 %v1931
    %2044 = vmatprep.subr.mxu0 0.0
    %2045 = vmatpush2.msra.mxu0 %v1930
    %2046 = vmatprep.subr.mxu0 0.0
    %2047 = vmatpush2.msra.mxu0 %v1929
    %2048 = vmatprep.subr.mxu0 0.0
    %2049 = vmatpush2.msra.mxu0 %v1928
    %2050 = vmatprep.subr.mxu0 0.0
    %2051 = vmatpush2.msra.mxu0 %v1927
    %2052 = vmatprep.subr.mxu0 0.0
    %2053 = vmatpush2.msra.mxu0 %v1926
    %2054 = vmatprep.subr.mxu0 0.0
    %2055 = vmatpush2.msra.mxu0 %v1925
    %2056 = vmatprep.subr.mxu0 0.0
    %2057 = vmatpush2.msra.mxu0 %v1924
    %2058 = vmatprep.subr.mxu0 0.0
    %2059 = vmatpush2.msra.mxu0 %v1923
    %2060 = vmatprep.subr.mxu0 0.0
    %2061 = vmatpush2.msra.mxu0 %v1922
    %2062 = vmatprep.subr.mxu0 0.0
    %2063 = vmatpush2.msra.mxu0 %v1921
    %2064 = vmatprep.subr.mxu0 0.0
    %2065 = vmatpush2.msra.mxu0 %v1920
    %2066 = vmatprep.subr.mxu0 0.0
    %2067 = vmatpush2.msra.mxu0 %v1919
    %2068 = vmatprep.subr.mxu0 0.0
    %2069 = vmatpush2.msra.mxu0 %v1918
    %2070 = vmatprep.subr.mxu0 0.0
    %2071 = vmatpush2.msra.mxu0 %v1917
    %2072 = vmatprep.subr.mxu0 0.0
    %2073 = vmatpush2.msra.mxu0 %v1916
    %2074 = vmatprep.mubr.f32.mxu0 %v2002
    %2075 = vmatmul.mubr.f32.gmra.mxu0 %v2001
    %v2076 = vpop.f32.mrf.mxu0
    %v2077 = vadd.f32 0.0, %v2076
    %v2078 = vpop.f32.mrf.mxu0
    %2079 = vdwg.mxu0
    %2080 = vmatprep.subr.mxu0 0.0
    %2081 = vmatpush1.msra.mxu0 %v1947
    %2082 = vmatprep.subr.mxu0 0.0
    %2083 = vmatpush1.msra.mxu0 %v1946
    %2084 = vmatprep.subr.mxu0 0.0
    %2085 = vmatpush1.msra.mxu0 %v1945
    %2086 = vmatprep.subr.mxu0 0.0
    %2087 = vmatpush1.msra.mxu0 %v1944
    %2088 = vmatprep.subr.mxu0 0.0
    %2089 = vmatpush1.msra.mxu0 %v1943
    %2090 = vmatprep.subr.mxu0 0.0
    %2091 = vmatpush1.msra.mxu0 %v1942
    %2092 = vmatprep.subr.mxu0 0.0
    %2093 = vmatpush1.msra.mxu0 %v1941
    %2094 = vmatprep.subr.mxu0 0.0
    %2095 = vmatpush1.msra.mxu0 %v1940
    %2096 = vmatprep.subr.mxu0 0.0
    %2097 = vmatpush1.msra.mxu0 %v1939
    %2098 = vmatprep.subr.mxu0 0.0
    %2099 = vmatpush1.msra.mxu0 %v1938
    %2100 = vmatprep.subr.mxu0 0.0
    %2101 = vmatpush1.msra.mxu0 %v1937
    %2102 = vmatprep.subr.mxu0 0.0
    %2103 = vmatpush1.msra.mxu0 %v1936
    %2104 = vmatprep.subr.mxu0 0.0
    %2105 = vmatpush1.msra.mxu0 %v1935
    %2106 = vmatprep.subr.mxu0 0.0
    %2107 = vmatpush1.msra.mxu0 %v1934
    %2108 = vmatprep.subr.mxu0 0.0
    %2109 = vmatpush1.msra.mxu0 %v1933
    %2110 = vmatprep.subr.mxu0 0.0
    %2111 = vmatpush1.msra.mxu0 %v1932
    %2112 = vmatprep.subr.mxu0 0.0
    %2113 = vmatpush2.msra.mxu0 %v1963
    %2114 = vmatprep.subr.mxu0 0.0
    %2115 = vmatpush2.msra.mxu0 %v1962
    %2116 = vmatprep.subr.mxu0 0.0
    %2117 = vmatpush2.msra.mxu0 %v1961
    %2118 = vmatprep.subr.mxu0 0.0
    %2119 = vmatpush2.msra.mxu0 %v1960
    %2120 = vmatprep.subr.mxu0 0.0
    %2121 = vmatpush2.msra.mxu0 %v1959
    %2122 = vmatprep.subr.mxu0 0.0
    %2123 = vmatpush2.msra.mxu0 %v1958
    %2124 = vmatprep.subr.mxu0 0.0
    %2125 = vmatpush2.msra.mxu0 %v1957
    %2126 = vmatprep.subr.mxu0 0.0
    %2127 = vmatpush2.msra.mxu0 %v1956
    %2128 = vmatprep.subr.mxu0 0.0
    %2129 = vmatpush2.msra.mxu0 %v1955
    %2130 = vmatprep.subr.mxu0 0.0
    %2131 = vmatpush2.msra.mxu0 %v1954
    %2132 = vmatprep.subr.mxu0 0.0
    %2133 = vmatpush2.msra.mxu0 %v1953
    %2134 = vmatprep.subr.mxu0 0.0
    %2135 = vmatpush2.msra.mxu0 %v1952
    %2136 = vmatprep.subr.mxu0 0.0
    %2137 = vmatpush2.msra.mxu0 %v1951
    %2138 = vmatprep.subr.mxu0 0.0
    %2139 = vmatpush2.msra.mxu0 %v1950
    %2140 = vmatprep.subr.mxu0 0.0
    %2141 = vmatpush2.msra.mxu0 %v1949
    %2142 = vmatprep.subr.mxu0 0.0
    %2143 = vmatpush2.msra.mxu0 %v1948
    %2144 = vmatprep.mubr.f32.mxu0 %v2004
    %2145 = vmatmul.mubr.f32.gmra.mxu0 %v2003
    %v2146 = vpop.f32.mrf.mxu0
    %v2147 = vadd.f32 %v2077, %v2146
    %v2148 = vpop.f32.mrf.mxu0
    %2149 = vdwg.mxu0
    %2150 = vmatprep.subr.mxu0 0.0
    %2151 = vmatpush1.msra.mxu0 0.0
    %2152 = vmatprep.subr.mxu0 0.0
    %2153 = vmatpush1.msra.mxu0 0.0
    %2154 = vmatprep.subr.mxu0 0.0
    %2155 = vmatpush1.msra.mxu0 0.0
    %2156 = vmatprep.subr.mxu0 0.0
    %2157 = vmatpush1.msra.mxu0 0.0
    %2158 = vmatprep.subr.mxu0 0.0
    %2159 = vmatpush1.msra.mxu0 0.0
    %2160 = vmatprep.subr.mxu0 0.0
    %2161 = vmatpush1.msra.mxu0 0.0
    %2162 = vmatprep.subr.mxu0 0.0
    %2163 = vmatpush1.msra.mxu0 0.0
    %2164 = vmatprep.subr.mxu0 0.0
    %2165 = vmatpush1.msra.mxu0 0.0
    %2166 = vmatprep.subr.mxu0 0.0
    %2167 = vmatpush1.msra.mxu0 %v1971
    %2168 = vmatprep.subr.mxu0 0.0
    %2169 = vmatpush1.msra.mxu0 %v1970
    %2170 = vmatprep.subr.mxu0 0.0
    %2171 = vmatpush1.msra.mxu0 %v1969
    %2172 = vmatprep.subr.mxu0 0.0
    %2173 = vmatpush1.msra.mxu0 %v1968
    %2174 = vmatprep.subr.mxu0 0.0
    %2175 = vmatpush1.msra.mxu0 %v1967
    %2176 = vmatprep.subr.mxu0 0.0
    %2177 = vmatpush1.msra.mxu0 %v1966
    %2178 = vmatprep.subr.mxu0 0.0
    %2179 = vmatpush1.msra.mxu0 %v1965
    %2180 = vmatprep.subr.mxu0 0.0
    %2181 = vmatpush1.msra.mxu0 %v1964
    %2182 = vmatprep.subr.mxu0 0.0
    %2183 = vmatpush2.msra.mxu0 0.0
    %2184 = vmatprep.subr.mxu0 0.0
    %2185 = vmatpush2.msra.mxu0 0.0
    %2186 = vmatprep.subr.mxu0 0.0
    %2187 = vmatpush2.msra.mxu0 0.0
    %2188 = vmatprep.subr.mxu0 0.0
    %2189 = vmatpush2.msra.mxu0 0.0
    %2190 = vmatprep.subr.mxu0 0.0
    %2191 = vmatpush2.msra.mxu0 0.0
    %2192 = vmatprep.subr.mxu0 0.0
    %2193 = vmatpush2.msra.mxu0 0.0
    %2194 = vmatprep.subr.mxu0 0.0
    %2195 = vmatpush2.msra.mxu0 0.0
    %2196 = vmatprep.subr.mxu0 0.0
    %2197 = vmatpush2.msra.mxu0 0.0
    %2198 = vmatprep.subr.mxu0 0.0
    %2199 = vmatpush2.msra.mxu0 0.0
    %2200 = vmatprep.subr.mxu0 0.0
    %2201 = vmatpush2.msra.mxu0 0.0
    %2202 = vmatprep.subr.mxu0 0.0
    %2203 = vmatpush2.msra.mxu0 0.0
    %2204 = vmatprep.subr.mxu0 0.0
    %2205 = vmatpush2.msra.mxu0 0.0
    %2206 = vmatprep.subr.mxu0 0.0
    %2207 = vmatpush2.msra.mxu0 0.0
    %2208 = vmatprep.subr.mxu0 0.0
    %2209 = vmatpush2.msra.mxu0 0.0
    %2210 = vmatprep.subr.mxu0 0.0
    %2211 = vmatpush2.msra.mxu0 0.0
    %2212 = vmatprep.subr.mxu0 0.0
    %2213 = vmatpush2.msra.mxu0 0.0
    %2214 = vmatprep.mubr.f32.mxu0 0.0
    %2215 = vmatmul.mubr.f32.gmra.mxu0 %v2008
    %v2216 = vpop.f32.mrf.mxu0
    %v2217 = vadd.f32 %v2147, %v2216
    %v2218 = vpop.f32.mrf.mxu0
    %2219 = vdwg.mxu0
    %v2220 = vpack.c.bf16 %v2217, %v2217
    %v2221 = vld [vmem:[%s3] sm:$0xf]
    %v2222 = vld [vmem:[%s3 + $0x4] sm:$0xf]
    %v2223 = vld [vmem:[%s3 + $0x8] sm:$0xf]
    %v2224 = vld [vmem:[%s3 + $0xc] sm:$0xf]
    %v2225 = vld [vmem:[%s4] sm:$0x1]
    %v2227 = vlaneseq
    %v2228 = vshrl.u32 %v2227, 7
    %v2229 = vsub.s32 0, %v2228
    %v2230 = vrot.slane %v2225, %v2229
    %v2236 = vunpack.c.l.b16 %v2221
    %v2237 = vunpack.c.l.b16 %v2222
    %v2238 = vunpack.c.l.b16 %v2223
    %v2239 = vunpack.c.l.b16 %v2224
    %v2240 = vpack.c.b16 %v2237, %v2236
    %v2241 = vpack.c.b16 %v2239, %v2238
    %vm2244 = vcmask 261120
    %v2246 = vsel %vm2244, %v2220, 0
    %2248 = vmatprep.subr.bf16.mxu0 0
    %2249 = vmatpush1.bf16.msra.mxu0 0
    %2250 = vmatprep.subr.bf16.mxu0 0
    %2251 = vmatpush1.bf16.msra.mxu0 0
    %2252 = vmatprep.subr.bf16.mxu0 0
    %2253 = vmatpush1.bf16.msra.mxu0 0
    %2254 = vmatprep.subr.bf16.mxu0 0
    %2255 = vmatpush1.bf16.msra.mxu0 0
    %2256 = vmatprep.subr.bf16.mxu0 0
    %2257 = vmatpush1.bf16.msra.mxu0 0
    %2258 = vmatprep.subr.bf16.mxu0 0
    %2259 = vmatpush1.bf16.msra.mxu0 0
    %2260 = vmatprep.subr.bf16.mxu0 0
    %2261 = vmatpush1.bf16.msra.mxu0 %v2241
    %2262 = vmatprep.subr.bf16.mxu0 0
    %2263 = vmatpush1.bf16.msra.mxu0 %v2240
    %2264 = vmatprep.subr.bf16.mxu0 0
    %2265 = vmatpush2.bf16.msra.mxu0 0
    %2266 = vmatprep.subr.bf16.mxu0 0
    %2267 = vmatpush2.bf16.msra.mxu0 0
    %2268 = vmatprep.subr.bf16.mxu0 0
    %2269 = vmatpush2.bf16.msra.mxu0 0
    %2270 = vmatprep.subr.bf16.mxu0 0
    %2271 = vmatpush2.bf16.msra.mxu0 0
    %2272 = vmatprep.subr.bf16.mxu0 0
    %2273 = vmatpush2.bf16.msra.mxu0 0
    %2274 = vmatprep.subr.bf16.mxu0 0
    %2275 = vmatpush2.bf16.msra.mxu0 0
    %2276 = vmatprep.subr.bf16.mxu0 0
    %2277 = vmatpush2.bf16.msra.mxu0 0
    %2278 = vmatprep.subr.bf16.mxu0 0
    %2279 = vmatpush2.bf16.msra.mxu0 0
    %2280 = vmatprep.mubr.bf16.mxu0 0
    %2281 = vmatmul.mubr.bf16.gmra.mxu0 %v2246
    %v2282 = vpop.f32.mrf.mxu0
    %v2283 = vadd.f32 %v2230, %v2282
    %v2284 = vpop.f32.mrf.mxu0
    %v2285 = vpop.f32.mrf.mxu0
    %v2286 = vpop.f32.mrf.mxu0
    %2287 = vdwg.mxu0
    %2288 = vst [vmem:[#allocation2] sm:$0x3] %v2283
    // Predicated region
    $region22: #{forward.1} parent=1 // pred_check
      _
    $region23: #{forward.1} parent=1 // pred_check_branch
      %2290 = sbr.rel (0) target = $region25
    $region24: #{forward.1} parent=1 // pred_region
      %s2292 = ssub.s32 32, 32
      %2293 = vsyncadd [#allocation3], %s2292
      %s2295 = sshll.u32 [#allocation2], 4
      %s2296 = int_to_ptr.vmem [resolvable:$true] %s2295
      %2298 = dma.vmem_to_hbm [thread:$0]  %s2296, 32, %s5, [#allocation3]
    $region25: #{forward.1} parent=1 // pred_fallthru
      _
    // Predicated region
    $region26: #{forward.1} parent=1 // pred_check
      _
    $region27: #{forward.1} parent=1 // pred_check_branch
      %2300 = sbr.rel (0) target = $region29
    $region28: #{forward.1} parent=1 // pred_region
      %2301 = dma.done [#allocation3], 32
    $region29: #{forward.1} parent=1 // pred_fallthru
      _
    %2302 = vsyncpa [#allocation3], 1

</llo_original>
